<compile_context>
chip_gen: v6e
topology: v6e:2x2x1
jax: 0.10.0
libtpu: 0.0.40
codegen_flags: <defaults>
</compile_context>

<pallas_src>
import functools

import jax
import jax.numpy as jnp
from jax.experimental import pallas as pl
from jax.experimental.pallas import tpu as pltpu


# ---------------------------------------------------------------------------
# Small helpers
# ---------------------------------------------------------------------------

def _round_up(x, m):
    return (x + m - 1) // m * m


def _cdiv(a, b):
    return (a + b - 1) // b


def _choose_tile(m, halo, cap=8192):
    # Largest lane tile (multiple of `halo`, itself a multiple of 128) up to
    # `cap`; keep >= 2 grid steps on larger levels so the "parallel" grid axis
    # can actually shard across the two v7x TensorCores.
    t = min(cap, _round_up(m, 128))
    if t >= m and m > 128:
        t = _round_up(_cdiv(m, 2), 128)
    t = max(t, halo)
    return _round_up(t, halo)


# ---------------------------------------------------------------------------
# Pallas kernels
# ---------------------------------------------------------------------------

def _build_slab(cur_ref, halo_ref, slab_ref, offsets, cin, tile):
    # Assemble the (9*Cin, tile) patch slab for this output tile from the
    # current activation block plus its halo block.  Every slice / store uses
    # static bounds (offsets are trace-time Python ints).
    for t, off in enumerate(offsets):
        r0 = t * cin
        if off == 0:
            slab_ref[r0:r0 + cin, :] = cur_ref[...]
        elif off < tile:
            slab_ref[r0:r0 + cin, :tile - off] = cur_ref[:, off:]
            slab_ref[r0:r0 + cin, tile - off:] = halo_ref[:, :off]
        else:  # only possible when off == tile == halo
            slab_ref[r0:r0 + cin, :] = halo_ref[:, off - tile:off]


def _conv_prelu_kernel(cur_ref, halo_ref, w_ref, b_ref, alpha_ref,
                       o_ref, slab_ref, *, offsets, cin, tile):
    # cur/halo: (Cin, tile)/(Cin, halo) bf16    w: (Cout, 9*Cin) bf16
    # b: (Cout, 1) f32    alpha: (1, 1) f32 in SMEM    o: (Cout, tile)
    _build_slab(cur_ref, halo_ref, slab_ref, offsets, cin, tile)
    acc = jnp.dot(w_ref[...], slab_ref[...],
                  preferred_element_type=jnp.float32)
    acc = acc + b_ref[...]
    alpha = alpha_ref[0, 0]
    acc = jnp.where(acc > 0, acc, alpha * acc)
    o_ref[...] = acc.astype(o_ref.dtype)


def _conv_prelu_head_kernel(cur_ref, halo_ref, w_ref, b_ref, wh_ref, bh_ref,
                            alpha_ref, o_ref, slab_ref, *, offsets, cin, tile):
    # conv3 + PReLU fused with the conv4_1 / conv4_2 1x1 heads.
    _build_slab(cur_ref, halo_ref, slab_ref, offsets, cin, tile)
    acc = jnp.dot(w_ref[...], slab_ref[...],
                  preferred_element_type=jnp.float32)
    acc = acc + b_ref[...]
    alpha = alpha_ref[0, 0]
    act = jnp.where(acc > 0, acc, alpha * acc)            # (32, tile) f32
    head = jnp.dot(wh_ref[...], act.astype(jnp.bfloat16),
                   preferred_element_type=jnp.float32)     # (5, tile)
    head = head + bh_ref[...]
    row = jax.lax.broadcasted_iota(jnp.int32, head.shape, 0)
    head = jnp.where(row == 0, jax.nn.sigmoid(head), head)  # sigmoid on row 0
    o_ref[...] = head.astype(o_ref.dtype)


# ---------------------------------------------------------------------------
# Pallas wrappers
# ---------------------------------------------------------------------------

def shift_conv3x3(x_flat, w_oihw, b, alpha, w_lay, head_w=None, head_b=None,
                  out_dtype=jnp.bfloat16):
    """3x3 VALID conv (+PReLU, + optional fused 1x1 heads) on a flat (Cin, M)
    activation laid out at the input spatial resolution (M = N*H*W).

    Output column m holds the conv value of the pixel whose flat index is m
    in the input grid; fringe positions (within 2 rows/cols of each image's
    right/bottom edge) hold garbage that is never consumed downstream.
    """
    cin, m = x_flat.shape
    cout = w_oihw.shape[0]
    maxoff = 2 * w_lay + 2
    halo = _round_up(maxoff, 128)
    tile = _choose_tile(m, halo)
    grid = _cdiv(m, tile)
    r = tile // halo
    nh = _cdiv(m, halo)
    offsets = tuple(di * w_lay + dj for di in range(3) for dj in range(3))

    # (Cout, Cin, 3, 3) -> (Cout, 9*Cin) in (di, dj, c) tap-major order so it
    # matches the slab row layout built by the kernel.
    w2 = jnp.transpose(w_oihw, (0, 2, 3, 1)).reshape(cout, 9 * cin)
    w2 = w2.astype(jnp.bfloat16)
    b2 = b.reshape(cout, 1).astype(jnp.float32)
    alpha_arr = jnp.asarray(alpha, jnp.float32).reshape(1, 1)

    cur_spec = pl.BlockSpec((cin, tile), lambda i: (0, i))
    halo_spec = pl.BlockSpec(
        (cin, halo), lambda i: (0, jnp.minimum((i + 1) * r, nh - 1)))
    w_spec = pl.BlockSpec((cout, 9 * cin), lambda i: (0, 0))
    b_spec = pl.BlockSpec((cout, 1), lambda i: (0, 0))
    alpha_spec = pl.BlockSpec(memory_space=pltpu.MemorySpace.SMEM)

    flops = 2 * cout * 9 * cin * m
    transcendentals = 0
    if head_w is None:
        out_c = cout
        kern = functools.partial(_conv_prelu_kernel, offsets=offsets,
                                 cin=cin, tile=tile)
        in_specs = [cur_spec, halo_spec, w_spec, b_spec, alpha_spec]
        args = (x_flat, x_flat, w2, b2, alpha_arr)
    else:
        out_c = head_w.shape[0]
        kern = functools.partial(_conv_prelu_head_kernel, offsets=offsets,
                                 cin=cin, tile=tile)
        in_specs = [cur_spec, halo_spec, w_spec, b_spec,
                    pl.BlockSpec((out_c, cout), lambda i: (0, 0)),
                    pl.BlockSpec((out_c, 1), lambda i: (0, 0)),
                    alpha_spec]
        args = (x_flat, x_flat, w2, b2,
                head_w.astype(jnp.bfloat16),
                head_b.reshape(out_c, 1).astype(jnp.float32),
                alpha_arr)
        flops += 2 * out_c * cout * m
        transcendentals = m

    out_bytes = jnp.dtype(out_dtype).itemsize
    bytes_accessed = int(cin * m * 2 * (1.0 + halo / tile)
                         + out_c * m * out_bytes + cout * 9 * cin * 2)
    cost = pl.CostEstimate(flops=flops, transcendentals=transcendentals,
                           bytes_accessed=bytes_accessed)

    return pl.pallas_call(
        kern,
        out_shape=jax.ShapeDtypeStruct((out_c, m), out_dtype),
        grid=(grid,),
        in_specs=in_specs,
        out_specs=pl.BlockSpec((out_c, tile), lambda i: (0, i)),
        scratch_shapes=[pltpu.VMEM((9 * cin, tile), jnp.bfloat16)],
        compiler_params=pltpu.CompilerParams(
            dimension_semantics=("parallel",),
            vmem_limit_bytes=32 * 1024 * 1024),
        cost_estimate=cost,
    )(*args)


def maxpool2x2_fullres(y_flat, c, n, h, w):
    """MaxPool2d(2, 2), floor mode, over the valid (H-2, W-2) region of the
    full-resolution flat conv1 output.  One fused XLA slice+reshape+reduce on
    bf16 (no materialized tap tensor).
    TODO(synk): move this spatial subsample fully in-kernel / fuse into conv1."""
    hp, wp = (h - 2) // 2, (w - 2) // 2
    y = y_flat.reshape(c, n, h, w)
    win = y[:, :, :2 * hp, :2 * wp].reshape(c, n, hp, 2, wp, 2)
    pooled = jnp.max(jnp.max(win, axis=5), axis=3)
    return pooled.reshape(c, n * hp * wp), hp, wp


# ---------------------------------------------------------------------------
# Deterministic parameter init (mirrors weights_init: xavier_uniform weights,
# bias = 0.1; nn.PReLU() is untouched by weights_init -> alpha = 0.25)
# ---------------------------------------------------------------------------

def _xavier_uniform(key, shape):
    cout, cin, kh, kw = shape
    fan_in = cin * kh * kw
    fan_out = cout * kh * kw
    bound = (6.0 / (fan_in + fan_out)) ** 0.5
    return jax.random.uniform(key, shape, jnp.float32, -bound, bound)


def init_pnet_params(key):
    ks = jax.random.split(key, 5)
    return {
        "conv1_w": _xavier_uniform(ks[0], (10, 3, 3, 3)),
        "conv1_b": jnp.full((10,), 0.1, jnp.float32),
        "conv2_w": _xavier_uniform(ks[1], (16, 10, 3, 3)),
        "conv2_b": jnp.full((16,), 0.1, jnp.float32),
        "conv3_w": _xavier_uniform(ks[2], (32, 16, 3, 3)),
        "conv3_b": jnp.full((32,), 0.1, jnp.float32),
        "conv4_1_w": _xavier_uniform(ks[3], (1, 32, 1, 1)),
        "conv4_1_b": jnp.full((1,), 0.1, jnp.float32),
        "conv4_2_w": _xavier_uniform(ks[4], (4, 32, 1, 1)),
        "conv4_2_b": jnp.full((4,), 0.1, jnp.float32),
        # nn.PReLU() default: single shared parameter, init value 0.25
        "prelu1": jnp.asarray(0.25, jnp.float32),
        "prelu2": jnp.asarray(0.25, jnp.float32),
        "prelu3": jnp.asarray(0.25, jnp.float32),
    }


# ---------------------------------------------------------------------------
# PNet forward (Pallas path) + pure-JAX reference
# ---------------------------------------------------------------------------

def pnet_forward(params, x_nchw):
    n, cin, h, w = x_nchw.shape
    # Lane-dense flat layout (Cin, N*H*W); bf16 matmul inputs.
    x = jnp.transpose(x_nchw, (1, 0, 2, 3)).reshape(cin, n * h * w)
    x = x.astype(jnp.bfloat16)

    # conv1 (3->10, 3x3) + PReLU -- full-resolution flat bf16 output.
    y1 = shift_conv3x3(x, params["conv1_w"], params["conv1_b"],
                       params["prelu1"], w)

    # 2x2 / stride-2 max pool over the valid (H-2, W-2) region.
    p, hp, wp = maxpool2x2_fullres(y1, 10, n, h, w)

    # conv2 (10->16, 3x3) + PReLU (bf16).
    y2 = shift_conv3x3(p, params["conv2_w"], params["conv2_b"],
                       params["prelu2"], wp)

    # conv3 (16->32, 3x3) + PReLU fused with conv4_1 / conv4_2 1x1 heads:
    # sigmoid(label) on head row 0, raw offsets on rows 1..4.  The 32-channel
    # conv3 activation never leaves VMEM.
    w_head = jnp.concatenate([params["conv4_1_w"].reshape(1, 32),
                              params["conv4_2_w"].reshape(4, 32)], axis=0)
    b_head = jnp.concatenate([params["conv4_1_b"], params["conv4_2_b"]])
    yh = shift_conv3x3(y2, params["conv3_w"], params["conv3_b"],
                       params["prelu3"], wp, head_w=w_head, head_b=b_head,
                       out_dtype=jnp.float32)

    # Extract the valid (Hp-4, Wp-4) region and return NCHW outputs.
    h3, w3 = hp - 4, wp - 4
    yh = yh.reshape(5, n, hp, wp)[:, :, :h3, :w3]
    label = jnp.transpose(yh[0:1], (1, 0, 2, 3))        # (N, 1, H3, W3)
    offset = jnp.transpose(yh[1:5], (1, 0, 2, 3))       # (N, 4, H3, W3)
    return label, offset


def pnet_reference(params, x_nchw):
    dn = ("NCHW", "OIHW", "NCHW")

    def conv(x, w, b):
        y = jax.lax.conv_general_dilated(x, w, (1, 1), "VALID",
                                         dimension_numbers=dn)
        return y + b.reshape(1, -1, 1, 1)

    def prelu(x, a):
        return jnp.where(x > 0, x, a * x)

    x = prelu(conv(x_nchw, params["conv1_w"], params["conv1_b"]), params["prelu1"])
    x = jax.lax.reduce_window(x, -jnp.inf, jax.lax.max,
                              (1, 1, 2, 2), (1, 1, 2, 2), "VALID")
    x = prelu(conv(x, params["conv2_w"], params["conv2_b"]), params["prelu2"])
    x = prelu(conv(x, params["conv3_w"], params["conv3_b"]), params["prelu3"])
    label = jax.nn.sigmoid(conv(x, params["conv4_1_w"], params["conv4_1_b"]))
    offset = conv(x, params["conv4_2_w"], params["conv4_2_b"])
    return label, offset


if __name__ == "__main__":
    key = jax.random.PRNGKey(0)
    pkey, xkey = jax.random.split(key)
    params = init_pnet_params(pkey)

    # Small input consistent with PNet (>= 12x12): batch=2, 3 channels, 16x16.
    x = jax.random.normal(xkey, (2, 3, 16, 16), dtype=jnp.float32)

    label, offset = jax.jit(pnet_forward)(params, x)
    jax.block_until_ready((label, offset))

    assert label.shape == (2, 1, 3, 3), label.shape
    assert offset.shape == (2, 4, 3, 3), offset.shape
    assert bool(jnp.all((label >= 0.0) & (label <= 1.0)))

    # Numerical check vs a pure-JAX (f32) reference; bf16 matmul inputs with
    # f32 accumulation keep the error well inside this tolerance.
    ref_label, ref_offset = jax.jit(pnet_reference)(params, x)
    assert bool(jnp.allclose(label, ref_label, atol=1e-1, rtol=1e-1))
    assert bool(jnp.allclose(offset, ref_offset, atol=1e-1, rtol=1e-1))

    print("KERNEL_OK")
</pallas_src>

<mosaic_0001>
module attributes {stable_mosaic.version = 11 : i64} {
  func.func @_conv_prelu_kernel(%arg0: i32, %arg1: memref<3x256xbf16, #tpu.memory_space<vmem>>, %arg2: memref<3x128xbf16, #tpu.memory_space<vmem>>, %arg3: memref<10x27xbf16, #tpu.memory_space<vmem>>, %arg4: memref<10x1xf32, #tpu.memory_space<vmem>>, %arg5: memref<1x1xf32, #tpu.memory_space<smem>>, %arg6: memref<10x256xbf16, #tpu.memory_space<vmem>>, %arg7: memref<27x256xbf16, #tpu.memory_space<vmem>>) attributes {dimension_semantics = [#tpu.dimension_semantics<parallel>], iteration_bounds = array<i64: 2>, scalar_prefetch = 0 : i64, scratch_operands = 1 : i64, tpu.core_type = #tpu.core_type<tc>, window_params = [{transform_indices = @transform_0, window_bounds = array<i64: 3, 256>}, {transform_indices = @transform_1, window_bounds = array<i64: 3, 128>}, {pipeline_mode = #tpu.pipeline_mode<synchronous>, transform_indices = @transform_2, window_bounds = array<i64: 10, 27>}, {pipeline_mode = #tpu.pipeline_mode<synchronous>, transform_indices = @transform_3, window_bounds = array<i64: 10, 1>}, {transform_indices = @transform_4, window_bounds = array<i64: 1, 1>}, {transform_indices = @transform_5, window_bounds = array<i64: 10, 256>}]} {
    %c0 = arith.constant 0 : index
    %c0_0 = arith.constant 0 : index
    %0 = vector.load %arg1[%c0, %c0_0] : memref<3x256xbf16, #tpu.memory_space<vmem>>, vector<3x256xbf16>
    %c0_1 = arith.constant 0 : index
    %c0_2 = arith.constant 0 : index
    %1 = vector.load %arg7[%c0_1, %c0_2] : memref<27x256xbf16, #tpu.memory_space<vmem>>, vector<3x256xbf16>
    tpu.vector_store %arg7[%c0_1, %c0_2], %0 {strides = array<i32>} : memref<27x256xbf16, #tpu.memory_space<vmem>>, vector<3x256xbf16>,
    %c0_3 = arith.constant 0 : index
    %c1 = arith.constant 1 : index
    %2 = vector.load %arg1[%c0_3, %c1] : memref<3x256xbf16, #tpu.memory_space<vmem>>, vector<3x255xbf16>
    %c3 = arith.constant 3 : index
    %c0_4 = arith.constant 0 : index
    %3 = vector.load %arg7[%c3, %c0_4] : memref<27x256xbf16, #tpu.memory_space<vmem>>, vector<3x255xbf16>
    tpu.vector_store %arg7[%c3, %c0_4], %2 {strides = array<i32>} : memref<27x256xbf16, #tpu.memory_space<vmem>>, vector<3x255xbf16>,
    %c0_5 = arith.constant 0 : index
    %c0_6 = arith.constant 0 : index
    %4 = vector.load %arg2[%c0_5, %c0_6] : memref<3x128xbf16, #tpu.memory_space<vmem>>, vector<3x1xbf16>
    %c3_7 = arith.constant 3 : index
    %c255 = arith.constant 255 : index
    %5 = vector.load %arg7[%c3_7, %c255] : memref<27x256xbf16, #tpu.memory_space<vmem>>, vector<3x1xbf16>
    tpu.vector_store %arg7[%c3_7, %c255], %4 {strides = array<i32>} : memref<27x256xbf16, #tpu.memory_space<vmem>>, vector<3x1xbf16>,
    %c0_8 = arith.constant 0 : index
    %c2 = arith.constant 2 : index
    %6 = vector.load %arg1[%c0_8, %c2] : memref<3x256xbf16, #tpu.memory_space<vmem>>, vector<3x254xbf16>
    %c6 = arith.constant 6 : index
    %c0_9 = arith.constant 0 : index
    %7 = vector.load %arg7[%c6, %c0_9] : memref<27x256xbf16, #tpu.memory_space<vmem>>, vector<3x254xbf16>
    tpu.vector_store %arg7[%c6, %c0_9], %6 {strides = array<i32>} : memref<27x256xbf16, #tpu.memory_space<vmem>>, vector<3x254xbf16>,
    %c0_10 = arith.constant 0 : index
    %c0_11 = arith.constant 0 : index
    %8 = vector.load %arg2[%c0_10, %c0_11] : memref<3x128xbf16, #tpu.memory_space<vmem>>, vector<3x2xbf16>
    %c6_12 = arith.constant 6 : index
    %c254 = arith.constant 254 : index
    %9 = vector.load %arg7[%c6_12, %c254] : memref<27x256xbf16, #tpu.memory_space<vmem>>, vector<3x2xbf16>
    tpu.vector_store %arg7[%c6_12, %c254], %8 {strides = array<i32>} : memref<27x256xbf16, #tpu.memory_space<vmem>>, vector<3x2xbf16>,
    %c0_13 = arith.constant 0 : index
    %c16 = arith.constant 16 : index
    %10 = vector.load %arg1[%c0_13, %c16] : memref<3x256xbf16, #tpu.memory_space<vmem>>, vector<3x240xbf16>
    %c9 = arith.constant 9 : index
    %c0_14 = arith.constant 0 : index
    %11 = vector.load %arg7[%c9, %c0_14] : memref<27x256xbf16, #tpu.memory_space<vmem>>, vector<3x240xbf16>
    tpu.vector_store %arg7[%c9, %c0_14], %10 {strides = array<i32>} : memref<27x256xbf16, #tpu.memory_space<vmem>>, vector<3x240xbf16>,
    %c0_15 = arith.constant 0 : index
    %c0_16 = arith.constant 0 : index
    %12 = vector.load %arg2[%c0_15, %c0_16] : memref<3x128xbf16, #tpu.memory_space<vmem>>, vector<3x16xbf16>
    %c9_17 = arith.constant 9 : index
    %c240 = arith.constant 240 : index
    %13 = vector.load %arg7[%c9_17, %c240] : memref<27x256xbf16, #tpu.memory_space<vmem>>, vector<3x16xbf16>
    tpu.vector_store %arg7[%c9_17, %c240], %12 {strides = array<i32>} : memref<27x256xbf16, #tpu.memory_space<vmem>>, vector<3x16xbf16>,
    %c0_18 = arith.constant 0 : index
    %c17 = arith.constant 17 : index
    %14 = vector.load %arg1[%c0_18, %c17] : memref<3x256xbf16, #tpu.memory_space<vmem>>, vector<3x239xbf16>
    %c12 = arith.constant 12 : index
    %c0_19 = arith.constant 0 : index
    %15 = vector.load %arg7[%c12, %c0_19] : memref<27x256xbf16, #tpu.memory_space<vmem>>, vector<3x239xbf16>
    tpu.vector_store %arg7[%c12, %c0_19], %14 {strides = array<i32>} : memref<27x256xbf16, #tpu.memory_space<vmem>>, vector<3x239xbf16>,
    %c0_20 = arith.constant 0 : index
    %c0_21 = arith.constant 0 : index
    %16 = vector.load %arg2[%c0_20, %c0_21] : memref<3x128xbf16, #tpu.memory_space<vmem>>, vector<3x17xbf16>
    %c12_22 = arith.constant 12 : index
    %c239 = arith.constant 239 : index
    %17 = vector.load %arg7[%c12_22, %c239] : memref<27x256xbf16, #tpu.memory_space<vmem>>, vector<3x17xbf16>
    tpu.vector_store %arg7[%c12_22, %c239], %16 {strides = array<i32>} : memref<27x256xbf16, #tpu.memory_space<vmem>>, vector<3x17xbf16>,
    %c0_23 = arith.constant 0 : index
    %c18 = arith.constant 18 : index
    %18 = vector.load %arg1[%c0_23, %c18] : memref<3x256xbf16, #tpu.memory_space<vmem>>, vector<3x238xbf16>
    %c15 = arith.constant 15 : index
    %c0_24 = arith.constant 0 : index
    %19 = vector.load %arg7[%c15, %c0_24] : memref<27x256xbf16, #tpu.memory_space<vmem>>, vector<3x238xbf16>
    tpu.vector_store %arg7[%c15, %c0_24], %18 {strides = array<i32>} : memref<27x256xbf16, #tpu.memory_space<vmem>>, vector<3x238xbf16>,
    %c0_25 = arith.constant 0 : index
    %c0_26 = arith.constant 0 : index
    %20 = vector.load %arg2[%c0_25, %c0_26] : memref<3x128xbf16, #tpu.memory_space<vmem>>, vector<3x18xbf16>
    %c15_27 = arith.constant 15 : index
    %c238 = arith.constant 238 : index
    %21 = vector.load %arg7[%c15_27, %c238] : memref<27x256xbf16, #tpu.memory_space<vmem>>, vector<3x18xbf16>
    tpu.vector_store %arg7[%c15_27, %c238], %20 {strides = array<i32>} : memref<27x256xbf16, #tpu.memory_space<vmem>>, vector<3x18xbf16>,
    %c0_28 = arith.constant 0 : index
    %c32 = arith.constant 32 : index
    %22 = vector.load %arg1[%c0_28, %c32] : memref<3x256xbf16, #tpu.memory_space<vmem>>, vector<3x224xbf16>
    %c18_29 = arith.constant 18 : index
    %c0_30 = arith.constant 0 : index
    %23 = vector.load %arg7[%c18_29, %c0_30] : memref<27x256xbf16, #tpu.memory_space<vmem>>, vector<3x224xbf16>
    tpu.vector_store %arg7[%c18_29, %c0_30], %22 {strides = array<i32>} : memref<27x256xbf16, #tpu.memory_space<vmem>>, vector<3x224xbf16>,
    %c0_31 = arith.constant 0 : index
    %c0_32 = arith.constant 0 : index
    %24 = vector.load %arg2[%c0_31, %c0_32] : memref<3x128xbf16, #tpu.memory_space<vmem>>, vector<3x32xbf16>
    %c18_33 = arith.constant 18 : index
    %c224 = arith.constant 224 : index
    %25 = vector.load %arg7[%c18_33, %c224] : memref<27x256xbf16, #tpu.memory_space<vmem>>, vector<3x32xbf16>
    tpu.vector_store %arg7[%c18_33, %c224], %24 {strides = array<i32>} : memref<27x256xbf16, #tpu.memory_space<vmem>>, vector<3x32xbf16>,
    %c0_34 = arith.constant 0 : index
    %c33 = arith.constant 33 : index
    %26 = vector.load %arg1[%c0_34, %c33] : memref<3x256xbf16, #tpu.memory_space<vmem>>, vector<3x223xbf16>
    %c21 = arith.constant 21 : index
    %c0_35 = arith.constant 0 : index
    %27 = vector.load %arg7[%c21, %c0_35] : memref<27x256xbf16, #tpu.memory_space<vmem>>, vector<3x223xbf16>
    tpu.vector_store %arg7[%c21, %c0_35], %26 {strides = array<i32>} : memref<27x256xbf16, #tpu.memory_space<vmem>>, vector<3x223xbf16>,
    %c0_36 = arith.constant 0 : index
    %c0_37 = arith.constant 0 : index
    %28 = vector.load %arg2[%c0_36, %c0_37] : memref<3x128xbf16, #tpu.memory_space<vmem>>, vector<3x33xbf16>
    %c21_38 = arith.constant 21 : index
    %c223 = arith.constant 223 : index
    %29 = vector.load %arg7[%c21_38, %c223] : memref<27x256xbf16, #tpu.memory_space<vmem>>, vector<3x33xbf16>
    tpu.vector_store %arg7[%c21_38, %c223], %28 {strides = array<i32>} : memref<27x256xbf16, #tpu.memory_space<vmem>>, vector<3x33xbf16>,
    %c0_39 = arith.constant 0 : index
    %c34 = arith.constant 34 : index
    %30 = vector.load %arg1[%c0_39, %c34] : memref<3x256xbf16, #tpu.memory_space<vmem>>, vector<3x222xbf16>
    %c24 = arith.constant 24 : index
    %c0_40 = arith.constant 0 : index
    %31 = vector.load %arg7[%c24, %c0_40] : memref<27x256xbf16, #tpu.memory_space<vmem>>, vector<3x222xbf16>
    tpu.vector_store %arg7[%c24, %c0_40], %30 {strides = array<i32>} : memref<27x256xbf16, #tpu.memory_space<vmem>>, vector<3x222xbf16>,
    %c0_41 = arith.constant 0 : index
    %c0_42 = arith.constant 0 : index
    %32 = vector.load %arg2[%c0_41, %c0_42] : memref<3x128xbf16, #tpu.memory_space<vmem>>, vector<3x34xbf16>
    %c24_43 = arith.constant 24 : index
    %c222 = arith.constant 222 : index
    %33 = vector.load %arg7[%c24_43, %c222] : memref<27x256xbf16, #tpu.memory_space<vmem>>, vector<3x34xbf16>
    tpu.vector_store %arg7[%c24_43, %c222], %32 {strides = array<i32>} : memref<27x256xbf16, #tpu.memory_space<vmem>>, vector<3x34xbf16>,
    %c0_44 = arith.constant 0 : index
    %c0_45 = arith.constant 0 : index
    %34 = vector.load %arg3[%c0_44, %c0_45] : memref<10x27xbf16, #tpu.memory_space<vmem>>, vector<10x27xbf16>
    %c0_46 = arith.constant 0 : index
    %c0_47 = arith.constant 0 : index
    %35 = vector.load %arg7[%c0_46, %c0_47] : memref<27x256xbf16, #tpu.memory_space<vmem>>, vector<27x256xbf16>
    %cst = arith.constant dense<0.000000e+00> : vector<10x256xf32>
    %36 = tpu.matmul %34, %35, %cst {dimension_numbers = #tpu.dot_dimension_numbers<[1], [0], [0], [1], [0, 0, 1, 1], [], []>} : vector<10x27xbf16>, vector<27x256xbf16>, vector<10x256xf32> -> vector<10x256xf32>
    %c0_48 = arith.constant 0 : index
    %c0_49 = arith.constant 0 : index
    %37 = vector.load %arg4[%c0_48, %c0_49] : memref<10x1xf32, #tpu.memory_space<vmem>>, vector<10x1xf32>
    %38 = vector.broadcast %37 : vector<10x1xf32> to vector<10x256xf32>
    %39 = arith.addf %36, %38 : vector<10x256xf32>
    %c0_50 = arith.constant 0 : index
    %c0_51 = arith.constant 0 : index
    %40 = memref.load %arg5[%c0_50, %c0_51] : memref<1x1xf32, #tpu.memory_space<smem>>
    %cst_52 = arith.constant 0.000000e+00 : f32
    %41 = vector.broadcast %cst_52 : f32 to vector<10x256xf32>
    %42 = arith.cmpf ogt, %39, %41 : vector<10x256xf32>
    %43 = vector.broadcast %40 : f32 to vector<10x256xf32>
    %44 = arith.mulf %43, %39 : vector<10x256xf32>
    %45 = arith.select %42, %39, %44 : vector<10x256xi1>, vector<10x256xf32>
    %46 = arith.truncf %45 : vector<10x256xf32> to vector<10x256xbf16>
    %c0_53 = arith.constant 0 : index
    %c0_54 = arith.constant 0 : index
    %47 = vector.load %arg6[%c0_53, %c0_54] : memref<10x256xbf16, #tpu.memory_space<vmem>>, vector<10x256xbf16>
    tpu.vector_store %arg6[%c0_53, %c0_54], %46 {strides = array<i32>} : memref<10x256xbf16, #tpu.memory_space<vmem>>, vector<10x256xbf16>,
    return
  }
  func.func @transform_0(%arg0: i32) -> (i32, i32) {
    %c0_i32 = arith.constant 0 : i32
    %c0_i32_0 = arith.constant 0 : i32
    return %c0_i32, %arg0 : i32, i32
  }
  func.func @transform_1(%arg0: i32) -> (i32, i32) {
    %c1_i32 = arith.constant 1 : i32
    %0 = arith.addi %arg0, %c1_i32 : i32
    %c2_i32 = arith.constant 2 : i32
    %1 = arith.muli %0, %c2_i32 : i32
    %c3_i32 = arith.constant 3 : i32
    %2 = arith.minsi %1, %c3_i32 : i32
    %c0_i32 = arith.constant 0 : i32
    %c0_i32_0 = arith.constant 0 : i32
    return %c0_i32, %2 : i32, i32
  }
  func.func @transform_2(%arg0: i32) -> (i32, i32) {
    %c0_i32 = arith.constant 0 : i32
    %c0_i32_0 = arith.constant 0 : i32
    %c0_i32_1 = arith.constant 0 : i32
    return %c0_i32, %c0_i32_0 : i32, i32
  }
  func.func @transform_3(%arg0: i32) -> (i32, i32) {
    %c0_i32 = arith.constant 0 : i32
    %c0_i32_0 = arith.constant 0 : i32
    %c0_i32_1 = arith.constant 0 : i32
    return %c0_i32, %c0_i32_0 : i32, i32
  }
  func.func @transform_4(%arg0: i32) -> (i32, i32) {
    %c0_i32 = arith.constant 0 : i32
    %c0_i32_0 = arith.constant 0 : i32
    %c0_i32_1 = arith.constant 0 : i32
    return %c0_i32, %c0_i32_0 : i32, i32
  }
  func.func @transform_5(%arg0: i32) -> (i32, i32) {
    %c0_i32 = arith.constant 0 : i32
    %c0_i32_0 = arith.constant 0 : i32
    return %c0_i32, %arg0 : i32, i32
  }
}

module attributes {stable_mosaic.version = 11 : i64} {
  func.func @_conv_prelu_kernel(%arg0: i32, %arg1: memref<10x128xbf16, #tpu.memory_space<vmem>>, %arg2: memref<10x128xbf16, #tpu.memory_space<vmem>>, %arg3: memref<16x90xbf16, #tpu.memory_space<vmem>>, %arg4: memref<16x1xf32, #tpu.memory_space<vmem>>, %arg5: memref<1x1xf32, #tpu.memory_space<smem>>, %arg6: memref<16x128xbf16, #tpu.memory_space<vmem>>, %arg7: memref<90x128xbf16, #tpu.memory_space<vmem>>) attributes {dimension_semantics = [#tpu.dimension_semantics<parallel>], iteration_bounds = array<i64: 1>, scalar_prefetch = 0 : i64, scratch_operands = 1 : i64, tpu.core_type = #tpu.core_type<tc>, window_params = [{transform_indices = @transform_0, window_bounds = array<i64: 10, 128>}, {transform_indices = @transform_1, window_bounds = array<i64: 10, 128>}, {pipeline_mode = #tpu.pipeline_mode<synchronous>, transform_indices = @transform_2, window_bounds = array<i64: 16, 90>}, {pipeline_mode = #tpu.pipeline_mode<synchronous>, transform_indices = @transform_3, window_bounds = array<i64: 16, 1>}, {transform_indices = @transform_4, window_bounds = array<i64: 1, 1>}, {transform_indices = @transform_5, window_bounds = array<i64: 16, 128>}]} {
    %c0 = arith.constant 0 : index
    %c0_0 = arith.constant 0 : index
    %0 = vector.load %arg1[%c0, %c0_0] : memref<10x128xbf16, #tpu.memory_space<vmem>>, vector<10x128xbf16>
    %c0_1 = arith.constant 0 : index
    %c0_2 = arith.constant 0 : index
    %1 = vector.load %arg7[%c0_1, %c0_2] : memref<90x128xbf16, #tpu.memory_space<vmem>>, vector<10x128xbf16>
    tpu.vector_store %arg7[%c0_1, %c0_2], %0 {strides = array<i32>} : memref<90x128xbf16, #tpu.memory_space<vmem>>, vector<10x128xbf16>,
    %c0_3 = arith.constant 0 : index
    %c1 = arith.constant 1 : index
    %2 = vector.load %arg1[%c0_3, %c1] : memref<10x128xbf16, #tpu.memory_space<vmem>>, vector<10x127xbf16>
    %c10 = arith.constant 10 : index
    %c0_4 = arith.constant 0 : index
    %3 = vector.load %arg7[%c10, %c0_4] : memref<90x128xbf16, #tpu.memory_space<vmem>>, vector<10x127xbf16>
    tpu.vector_store %arg7[%c10, %c0_4], %2 {strides = array<i32>} : memref<90x128xbf16, #tpu.memory_space<vmem>>, vector<10x127xbf16>,
    %c0_5 = arith.constant 0 : index
    %c0_6 = arith.constant 0 : index
    %4 = vector.load %arg2[%c0_5, %c0_6] : memref<10x128xbf16, #tpu.memory_space<vmem>>, vector<10x1xbf16>
    %c10_7 = arith.constant 10 : index
    %c127 = arith.constant 127 : index
    %5 = vector.load %arg7[%c10_7, %c127] : memref<90x128xbf16, #tpu.memory_space<vmem>>, vector<10x1xbf16>
    tpu.vector_store %arg7[%c10_7, %c127], %4 {strides = array<i32>} : memref<90x128xbf16, #tpu.memory_space<vmem>>, vector<10x1xbf16>,
    %c0_8 = arith.constant 0 : index
    %c2 = arith.constant 2 : index
    %6 = vector.load %arg1[%c0_8, %c2] : memref<10x128xbf16, #tpu.memory_space<vmem>>, vector<10x126xbf16>
    %c20 = arith.constant 20 : index
    %c0_9 = arith.constant 0 : index
    %7 = vector.load %arg7[%c20, %c0_9] : memref<90x128xbf16, #tpu.memory_space<vmem>>, vector<10x126xbf16>
    tpu.vector_store %arg7[%c20, %c0_9], %6 {strides = array<i32>} : memref<90x128xbf16, #tpu.memory_space<vmem>>, vector<10x126xbf16>,
    %c0_10 = arith.constant 0 : index
    %c0_11 = arith.constant 0 : index
    %8 = vector.load %arg2[%c0_10, %c0_11] : memref<10x128xbf16, #tpu.memory_space<vmem>>, vector<10x2xbf16>
    %c20_12 = arith.constant 20 : index
    %c126 = arith.constant 126 : index
    %9 = vector.load %arg7[%c20_12, %c126] : memref<90x128xbf16, #tpu.memory_space<vmem>>, vector<10x2xbf16>
    tpu.vector_store %arg7[%c20_12, %c126], %8 {strides = array<i32>} : memref<90x128xbf16, #tpu.memory_space<vmem>>, vector<10x2xbf16>,
    %c0_13 = arith.constant 0 : index
    %c7 = arith.constant 7 : index
    %10 = vector.load %arg1[%c0_13, %c7] : memref<10x128xbf16, #tpu.memory_space<vmem>>, vector<10x121xbf16>
    %c30 = arith.constant 30 : index
    %c0_14 = arith.constant 0 : index
    %11 = vector.load %arg7[%c30, %c0_14] : memref<90x128xbf16, #tpu.memory_space<vmem>>, vector<10x121xbf16>
    tpu.vector_store %arg7[%c30, %c0_14], %10 {strides = array<i32>} : memref<90x128xbf16, #tpu.memory_space<vmem>>, vector<10x121xbf16>,
    %c0_15 = arith.constant 0 : index
    %c0_16 = arith.constant 0 : index
    %12 = vector.load %arg2[%c0_15, %c0_16] : memref<10x128xbf16, #tpu.memory_space<vmem>>, vector<10x7xbf16>
    %c30_17 = arith.constant 30 : index
    %c121 = arith.constant 121 : index
    %13 = vector.load %arg7[%c30_17, %c121] : memref<90x128xbf16, #tpu.memory_space<vmem>>, vector<10x7xbf16>
    tpu.vector_store %arg7[%c30_17, %c121], %12 {strides = array<i32>} : memref<90x128xbf16, #tpu.memory_space<vmem>>, vector<10x7xbf16>,
    %c0_18 = arith.constant 0 : index
    %c8 = arith.constant 8 : index
    %14 = vector.load %arg1[%c0_18, %c8] : memref<10x128xbf16, #tpu.memory_space<vmem>>, vector<10x120xbf16>
    %c40 = arith.constant 40 : index
    %c0_19 = arith.constant 0 : index
    %15 = vector.load %arg7[%c40, %c0_19] : memref<90x128xbf16, #tpu.memory_space<vmem>>, vector<10x120xbf16>
    tpu.vector_store %arg7[%c40, %c0_19], %14 {strides = array<i32>} : memref<90x128xbf16, #tpu.memory_space<vmem>>, vector<10x120xbf16>,
    %c0_20 = arith.constant 0 : index
    %c0_21 = arith.constant 0 : index
    %16 = vector.load %arg2[%c0_20, %c0_21] : memref<10x128xbf16, #tpu.memory_space<vmem>>, vector<10x8xbf16>
    %c40_22 = arith.constant 40 : index
    %c120 = arith.constant 120 : index
    %17 = vector.load %arg7[%c40_22, %c120] : memref<90x128xbf16, #tpu.memory_space<vmem>>, vector<10x8xbf16>
    tpu.vector_store %arg7[%c40_22, %c120], %16 {strides = array<i32>} : memref<90x128xbf16, #tpu.memory_space<vmem>>, vector<10x8xbf16>,
    %c0_23 = arith.constant 0 : index
    %c9 = arith.constant 9 : index
    %18 = vector.load %arg1[%c0_23, %c9] : memref<10x128xbf16, #tpu.memory_space<vmem>>, vector<10x119xbf16>
    %c50 = arith.constant 50 : index
    %c0_24 = arith.constant 0 : index
    %19 = vector.load %arg7[%c50, %c0_24] : memref<90x128xbf16, #tpu.memory_space<vmem>>, vector<10x119xbf16>
    tpu.vector_store %arg7[%c50, %c0_24], %18 {strides = array<i32>} : memref<90x128xbf16, #tpu.memory_space<vmem>>, vector<10x119xbf16>,
    %c0_25 = arith.constant 0 : index
    %c0_26 = arith.constant 0 : index
    %20 = vector.load %arg2[%c0_25, %c0_26] : memref<10x128xbf16, #tpu.memory_space<vmem>>, vector<10x9xbf16>
    %c50_27 = arith.constant 50 : index
    %c119 = arith.constant 119 : index
    %21 = vector.load %arg7[%c50_27, %c119] : memref<90x128xbf16, #tpu.memory_space<vmem>>, vector<10x9xbf16>
    tpu.vector_store %arg7[%c50_27, %c119], %20 {strides = array<i32>} : memref<90x128xbf16, #tpu.memory_space<vmem>>, vector<10x9xbf16>,
    %c0_28 = arith.constant 0 : index
    %c14 = arith.constant 14 : index
    %22 = vector.load %arg1[%c0_28, %c14] : memref<10x128xbf16, #tpu.memory_space<vmem>>, vector<10x114xbf16>
    %c60 = arith.constant 60 : index
    %c0_29 = arith.constant 0 : index
    %23 = vector.load %arg7[%c60, %c0_29] : memref<90x128xbf16, #tpu.memory_space<vmem>>, vector<10x114xbf16>
    tpu.vector_store %arg7[%c60, %c0_29], %22 {strides = array<i32>} : memref<90x128xbf16, #tpu.memory_space<vmem>>, vector<10x114xbf16>,
    %c0_30 = arith.constant 0 : index
    %c0_31 = arith.constant 0 : index
    %24 = vector.load %arg2[%c0_30, %c0_31] : memref<10x128xbf16, #tpu.memory_space<vmem>>, vector<10x14xbf16>
    %c60_32 = arith.constant 60 : index
    %c114 = arith.constant 114 : index
    %25 = vector.load %arg7[%c60_32, %c114] : memref<90x128xbf16, #tpu.memory_space<vmem>>, vector<10x14xbf16>
    tpu.vector_store %arg7[%c60_32, %c114], %24 {strides = array<i32>} : memref<90x128xbf16, #tpu.memory_space<vmem>>, vector<10x14xbf16>,
    %c0_33 = arith.constant 0 : index
    %c15 = arith.constant 15 : index
    %26 = vector.load %arg1[%c0_33, %c15] : memref<10x128xbf16, #tpu.memory_space<vmem>>, vector<10x113xbf16>
    %c70 = arith.constant 70 : index
    %c0_34 = arith.constant 0 : index
    %27 = vector.load %arg7[%c70, %c0_34] : memref<90x128xbf16, #tpu.memory_space<vmem>>, vector<10x113xbf16>
    tpu.vector_store %arg7[%c70, %c0_34], %26 {strides = array<i32>} : memref<90x128xbf16, #tpu.memory_space<vmem>>, vector<10x113xbf16>,
    %c0_35 = arith.constant 0 : index
    %c0_36 = arith.constant 0 : index
    %28 = vector.load %arg2[%c0_35, %c0_36] : memref<10x128xbf16, #tpu.memory_space<vmem>>, vector<10x15xbf16>
    %c70_37 = arith.constant 70 : index
    %c113 = arith.constant 113 : index
    %29 = vector.load %arg7[%c70_37, %c113] : memref<90x128xbf16, #tpu.memory_space<vmem>>, vector<10x15xbf16>
    tpu.vector_store %arg7[%c70_37, %c113], %28 {strides = array<i32>} : memref<90x128xbf16, #tpu.memory_space<vmem>>, vector<10x15xbf16>,
    %c0_38 = arith.constant 0 : index
    %c16 = arith.constant 16 : index
    %30 = vector.load %arg1[%c0_38, %c16] : memref<10x128xbf16, #tpu.memory_space<vmem>>, vector<10x112xbf16>
    %c80 = arith.constant 80 : index
    %c0_39 = arith.constant 0 : index
    %31 = vector.load %arg7[%c80, %c0_39] : memref<90x128xbf16, #tpu.memory_space<vmem>>, vector<10x112xbf16>
    tpu.vector_store %arg7[%c80, %c0_39], %30 {strides = array<i32>} : memref<90x128xbf16, #tpu.memory_space<vmem>>, vector<10x112xbf16>,
    %c0_40 = arith.constant 0 : index
    %c0_41 = arith.constant 0 : index
    %32 = vector.load %arg2[%c0_40, %c0_41] : memref<10x128xbf16, #tpu.memory_space<vmem>>, vector<10x16xbf16>
    %c80_42 = arith.constant 80 : index
    %c112 = arith.constant 112 : index
    %33 = vector.load %arg7[%c80_42, %c112] : memref<90x128xbf16, #tpu.memory_space<vmem>>, vector<10x16xbf16>
    tpu.vector_store %arg7[%c80_42, %c112], %32 {strides = array<i32>} : memref<90x128xbf16, #tpu.memory_space<vmem>>, vector<10x16xbf16>,
    %c0_43 = arith.constant 0 : index
    %c0_44 = arith.constant 0 : index
    %34 = vector.load %arg3[%c0_43, %c0_44] : memref<16x90xbf16, #tpu.memory_space<vmem>>, vector<16x90xbf16>
    %c0_45 = arith.constant 0 : index
    %c0_46 = arith.constant 0 : index
    %35 = vector.load %arg7[%c0_45, %c0_46] : memref<90x128xbf16, #tpu.memory_space<vmem>>, vector<90x128xbf16>
    %cst = arith.constant dense<0.000000e+00> : vector<16x128xf32>
    %36 = tpu.matmul %34, %35, %cst {dimension_numbers = #tpu.dot_dimension_numbers<[1], [0], [0], [1], [0, 0, 1, 1], [], []>} : vector<16x90xbf16>, vector<90x128xbf16>, vector<16x128xf32> -> vector<16x128xf32>
    %c0_47 = arith.constant 0 : index
    %c0_48 = arith.constant 0 : index
    %37 = vector.load %arg4[%c0_47, %c0_48] : memref<16x1xf32, #tpu.memory_space<vmem>>, vector<16x1xf32>
    %38 = vector.broadcast %37 : vector<16x1xf32> to vector<16x128xf32>
    %39 = arith.addf %36, %38 : vector<16x128xf32>
    %c0_49 = arith.constant 0 : index
    %c0_50 = arith.constant 0 : index
    %40 = memref.load %arg5[%c0_49, %c0_50] : memref<1x1xf32, #tpu.memory_space<smem>>
    %cst_51 = arith.constant 0.000000e+00 : f32
    %41 = vector.broadcast %cst_51 : f32 to vector<16x128xf32>
    %42 = arith.cmpf ogt, %39, %41 : vector<16x128xf32>
    %43 = vector.broadcast %40 : f32 to vector<16x128xf32>
    %44 = arith.mulf %43, %39 : vector<16x128xf32>
    %45 = arith.select %42, %39, %44 : vector<16x128xi1>, vector<16x128xf32>
    %46 = arith.truncf %45 : vector<16x128xf32> to vector<16x128xbf16>
    %c0_52 = arith.constant 0 : index
    %c0_53 = arith.constant 0 : index
    %47 = vector.load %arg6[%c0_52, %c0_53] : memref<16x128xbf16, #tpu.memory_space<vmem>>, vector<16x128xbf16>
    tpu.vector_store %arg6[%c0_52, %c0_53], %46 {strides = array<i32>} : memref<16x128xbf16, #tpu.memory_space<vmem>>, vector<16x128xbf16>,
    return
  }
  func.func @transform_0(%arg0: i32) -> (i32, i32) {
    %c0_i32 = arith.constant 0 : i32
    %c0_i32_0 = arith.constant 0 : i32
    return %c0_i32, %arg0 : i32, i32
  }
  func.func @transform_1(%arg0: i32) -> (i32, i32) {
    %c1_i32 = arith.constant 1 : i32
    %0 = arith.addi %arg0, %c1_i32 : i32
    %c1_i32_0 = arith.constant 1 : i32
    %1 = arith.muli %0, %c1_i32_0 : i32
    %c0_i32 = arith.constant 0 : i32
    %2 = arith.minsi %1, %c0_i32 : i32
    %c0_i32_1 = arith.constant 0 : i32
    %c0_i32_2 = arith.constant 0 : i32
    return %c0_i32_1, %2 : i32, i32
  }
  func.func @transform_2(%arg0: i32) -> (i32, i32) {
    %c0_i32 = arith.constant 0 : i32
    %c0_i32_0 = arith.constant 0 : i32
    %c0_i32_1 = arith.constant 0 : i32
    return %c0_i32, %c0_i32_0 : i32, i32
  }
  func.func @transform_3(%arg0: i32) -> (i32, i32) {
    %c0_i32 = arith.constant 0 : i32
    %c0_i32_0 = arith.constant 0 : i32
    %c0_i32_1 = arith.constant 0 : i32
    return %c0_i32, %c0_i32_0 : i32, i32
  }
  func.func @transform_4(%arg0: i32) -> (i32, i32) {
    %c0_i32 = arith.constant 0 : i32
    %c0_i32_0 = arith.constant 0 : i32
    %c0_i32_1 = arith.constant 0 : i32
    return %c0_i32, %c0_i32_0 : i32, i32
  }
  func.func @transform_5(%arg0: i32) -> (i32, i32) {
    %c0_i32 = arith.constant 0 : i32
    %c0_i32_0 = arith.constant 0 : i32
    return %c0_i32, %arg0 : i32, i32
  }
}

module attributes {stable_mosaic.version = 11 : i64} {
  func.func @_conv_prelu_head_kernel(%arg0: i32, %arg1: memref<16x128xbf16, #tpu.memory_space<vmem>>, %arg2: memref<16x128xbf16, #tpu.memory_space<vmem>>, %arg3: memref<32x144xbf16, #tpu.memory_space<vmem>>, %arg4: memref<32x1xf32, #tpu.memory_space<vmem>>, %arg5: memref<5x32xbf16, #tpu.memory_space<vmem>>, %arg6: memref<5x1xf32, #tpu.memory_space<vmem>>, %arg7: memref<1x1xf32, #tpu.memory_space<smem>>, %arg8: memref<5x128xf32, #tpu.memory_space<vmem>>, %arg9: memref<144x128xbf16, #tpu.memory_space<vmem>>) attributes {dimension_semantics = [#tpu.dimension_semantics<parallel>], iteration_bounds = array<i64: 1>, scalar_prefetch = 0 : i64, scratch_operands = 1 : i64, tpu.core_type = #tpu.core_type<tc>, window_params = [{transform_indices = @transform_0, window_bounds = array<i64: 16, 128>}, {transform_indices = @transform_1, window_bounds = array<i64: 16, 128>}, {pipeline_mode = #tpu.pipeline_mode<synchronous>, transform_indices = @transform_2, window_bounds = array<i64: 32, 144>}, {pipeline_mode = #tpu.pipeline_mode<synchronous>, transform_indices = @transform_3, window_bounds = array<i64: 32, 1>}, {pipeline_mode = #tpu.pipeline_mode<synchronous>, transform_indices = @transform_4, window_bounds = array<i64: 5, 32>}, {pipeline_mode = #tpu.pipeline_mode<synchronous>, transform_indices = @transform_5, window_bounds = array<i64: 5, 1>}, {transform_indices = @transform_6, window_bounds = array<i64: 1, 1>}, {transform_indices = @transform_7, window_bounds = array<i64: 5, 128>}]} {
    %c0 = arith.constant 0 : index
    %c0_0 = arith.constant 0 : index
    %0 = vector.load %arg1[%c0, %c0_0] : memref<16x128xbf16, #tpu.memory_space<vmem>>, vector<16x128xbf16>
    %c0_1 = arith.constant 0 : index
    %c0_2 = arith.constant 0 : index
    %1 = vector.load %arg9[%c0_1, %c0_2] : memref<144x128xbf16, #tpu.memory_space<vmem>>, vector<16x128xbf16>
    tpu.vector_store %arg9[%c0_1, %c0_2], %0 {strides = array<i32>} : memref<144x128xbf16, #tpu.memory_space<vmem>>, vector<16x128xbf16>,
    %c0_3 = arith.constant 0 : index
    %c1 = arith.constant 1 : index
    %2 = vector.load %arg1[%c0_3, %c1] : memref<16x128xbf16, #tpu.memory_space<vmem>>, vector<16x127xbf16>
    %c16 = arith.constant 16 : index
    %c0_4 = arith.constant 0 : index
    %3 = vector.load %arg9[%c16, %c0_4] : memref<144x128xbf16, #tpu.memory_space<vmem>>, vector<16x127xbf16>
    tpu.vector_store %arg9[%c16, %c0_4], %2 {strides = array<i32>} : memref<144x128xbf16, #tpu.memory_space<vmem>>, vector<16x127xbf16>,
    %c0_5 = arith.constant 0 : index
    %c0_6 = arith.constant 0 : index
    %4 = vector.load %arg2[%c0_5, %c0_6] : memref<16x128xbf16, #tpu.memory_space<vmem>>, vector<16x1xbf16>
    %c16_7 = arith.constant 16 : index
    %c127 = arith.constant 127 : index
    %5 = vector.load %arg9[%c16_7, %c127] : memref<144x128xbf16, #tpu.memory_space<vmem>>, vector<16x1xbf16>
    tpu.vector_store %arg9[%c16_7, %c127], %4 {strides = array<i32>} : memref<144x128xbf16, #tpu.memory_space<vmem>>, vector<16x1xbf16>,
    %c0_8 = arith.constant 0 : index
    %c2 = arith.constant 2 : index
    %6 = vector.load %arg1[%c0_8, %c2] : memref<16x128xbf16, #tpu.memory_space<vmem>>, vector<16x126xbf16>
    %c32 = arith.constant 32 : index
    %c0_9 = arith.constant 0 : index
    %7 = vector.load %arg9[%c32, %c0_9] : memref<144x128xbf16, #tpu.memory_space<vmem>>, vector<16x126xbf16>
    tpu.vector_store %arg9[%c32, %c0_9], %6 {strides = array<i32>} : memref<144x128xbf16, #tpu.memory_space<vmem>>, vector<16x126xbf16>,
    %c0_10 = arith.constant 0 : index
    %c0_11 = arith.constant 0 : index
    %8 = vector.load %arg2[%c0_10, %c0_11] : memref<16x128xbf16, #tpu.memory_space<vmem>>, vector<16x2xbf16>
    %c32_12 = arith.constant 32 : index
    %c126 = arith.constant 126 : index
    %9 = vector.load %arg9[%c32_12, %c126] : memref<144x128xbf16, #tpu.memory_space<vmem>>, vector<16x2xbf16>
    tpu.vector_store %arg9[%c32_12, %c126], %8 {strides = array<i32>} : memref<144x128xbf16, #tpu.memory_space<vmem>>, vector<16x2xbf16>,
    %c0_13 = arith.constant 0 : index
    %c7 = arith.constant 7 : index
    %10 = vector.load %arg1[%c0_13, %c7] : memref<16x128xbf16, #tpu.memory_space<vmem>>, vector<16x121xbf16>
    %c48 = arith.constant 48 : index
    %c0_14 = arith.constant 0 : index
    %11 = vector.load %arg9[%c48, %c0_14] : memref<144x128xbf16, #tpu.memory_space<vmem>>, vector<16x121xbf16>
    tpu.vector_store %arg9[%c48, %c0_14], %10 {strides = array<i32>} : memref<144x128xbf16, #tpu.memory_space<vmem>>, vector<16x121xbf16>,
    %c0_15 = arith.constant 0 : index
    %c0_16 = arith.constant 0 : index
    %12 = vector.load %arg2[%c0_15, %c0_16] : memref<16x128xbf16, #tpu.memory_space<vmem>>, vector<16x7xbf16>
    %c48_17 = arith.constant 48 : index
    %c121 = arith.constant 121 : index
    %13 = vector.load %arg9[%c48_17, %c121] : memref<144x128xbf16, #tpu.memory_space<vmem>>, vector<16x7xbf16>
    tpu.vector_store %arg9[%c48_17, %c121], %12 {strides = array<i32>} : memref<144x128xbf16, #tpu.memory_space<vmem>>, vector<16x7xbf16>,
    %c0_18 = arith.constant 0 : index
    %c8 = arith.constant 8 : index
    %14 = vector.load %arg1[%c0_18, %c8] : memref<16x128xbf16, #tpu.memory_space<vmem>>, vector<16x120xbf16>
    %c64 = arith.constant 64 : index
    %c0_19 = arith.constant 0 : index
    %15 = vector.load %arg9[%c64, %c0_19] : memref<144x128xbf16, #tpu.memory_space<vmem>>, vector<16x120xbf16>
    tpu.vector_store %arg9[%c64, %c0_19], %14 {strides = array<i32>} : memref<144x128xbf16, #tpu.memory_space<vmem>>, vector<16x120xbf16>,
    %c0_20 = arith.constant 0 : index
    %c0_21 = arith.constant 0 : index
    %16 = vector.load %arg2[%c0_20, %c0_21] : memref<16x128xbf16, #tpu.memory_space<vmem>>, vector<16x8xbf16>
    %c64_22 = arith.constant 64 : index
    %c120 = arith.constant 120 : index
    %17 = vector.load %arg9[%c64_22, %c120] : memref<144x128xbf16, #tpu.memory_space<vmem>>, vector<16x8xbf16>
    tpu.vector_store %arg9[%c64_22, %c120], %16 {strides = array<i32>} : memref<144x128xbf16, #tpu.memory_space<vmem>>, vector<16x8xbf16>,
    %c0_23 = arith.constant 0 : index
    %c9 = arith.constant 9 : index
    %18 = vector.load %arg1[%c0_23, %c9] : memref<16x128xbf16, #tpu.memory_space<vmem>>, vector<16x119xbf16>
    %c80 = arith.constant 80 : index
    %c0_24 = arith.constant 0 : index
    %19 = vector.load %arg9[%c80, %c0_24] : memref<144x128xbf16, #tpu.memory_space<vmem>>, vector<16x119xbf16>
    tpu.vector_store %arg9[%c80, %c0_24], %18 {strides = array<i32>} : memref<144x128xbf16, #tpu.memory_space<vmem>>, vector<16x119xbf16>,
    %c0_25 = arith.constant 0 : index
    %c0_26 = arith.constant 0 : index
    %20 = vector.load %arg2[%c0_25, %c0_26] : memref<16x128xbf16, #tpu.memory_space<vmem>>, vector<16x9xbf16>
    %c80_27 = arith.constant 80 : index
    %c119 = arith.constant 119 : index
    %21 = vector.load %arg9[%c80_27, %c119] : memref<144x128xbf16, #tpu.memory_space<vmem>>, vector<16x9xbf16>
    tpu.vector_store %arg9[%c80_27, %c119], %20 {strides = array<i32>} : memref<144x128xbf16, #tpu.memory_space<vmem>>, vector<16x9xbf16>,
    %c0_28 = arith.constant 0 : index
    %c14 = arith.constant 14 : index
    %22 = vector.load %arg1[%c0_28, %c14] : memref<16x128xbf16, #tpu.memory_space<vmem>>, vector<16x114xbf16>
    %c96 = arith.constant 96 : index
    %c0_29 = arith.constant 0 : index
    %23 = vector.load %arg9[%c96, %c0_29] : memref<144x128xbf16, #tpu.memory_space<vmem>>, vector<16x114xbf16>
    tpu.vector_store %arg9[%c96, %c0_29], %22 {strides = array<i32>} : memref<144x128xbf16, #tpu.memory_space<vmem>>, vector<16x114xbf16>,
    %c0_30 = arith.constant 0 : index
    %c0_31 = arith.constant 0 : index
    %24 = vector.load %arg2[%c0_30, %c0_31] : memref<16x128xbf16, #tpu.memory_space<vmem>>, vector<16x14xbf16>
    %c96_32 = arith.constant 96 : index
    %c114 = arith.constant 114 : index
    %25 = vector.load %arg9[%c96_32, %c114] : memref<144x128xbf16, #tpu.memory_space<vmem>>, vector<16x14xbf16>
    tpu.vector_store %arg9[%c96_32, %c114], %24 {strides = array<i32>} : memref<144x128xbf16, #tpu.memory_space<vmem>>, vector<16x14xbf16>,
    %c0_33 = arith.constant 0 : index
    %c15 = arith.constant 15 : index
    %26 = vector.load %arg1[%c0_33, %c15] : memref<16x128xbf16, #tpu.memory_space<vmem>>, vector<16x113xbf16>
    %c112 = arith.constant 112 : index
    %c0_34 = arith.constant 0 : index
    %27 = vector.load %arg9[%c112, %c0_34] : memref<144x128xbf16, #tpu.memory_space<vmem>>, vector<16x113xbf16>
    tpu.vector_store %arg9[%c112, %c0_34], %26 {strides = array<i32>} : memref<144x128xbf16, #tpu.memory_space<vmem>>, vector<16x113xbf16>,
    %c0_35 = arith.constant 0 : index
    %c0_36 = arith.constant 0 : index
    %28 = vector.load %arg2[%c0_35, %c0_36] : memref<16x128xbf16, #tpu.memory_space<vmem>>, vector<16x15xbf16>
    %c112_37 = arith.constant 112 : index
    %c113 = arith.constant 113 : index
    %29 = vector.load %arg9[%c112_37, %c113] : memref<144x128xbf16, #tpu.memory_space<vmem>>, vector<16x15xbf16>
    tpu.vector_store %arg9[%c112_37, %c113], %28 {strides = array<i32>} : memref<144x128xbf16, #tpu.memory_space<vmem>>, vector<16x15xbf16>,
    %c0_38 = arith.constant 0 : index
    %c16_39 = arith.constant 16 : index
    %30 = vector.load %arg1[%c0_38, %c16_39] : memref<16x128xbf16, #tpu.memory_space<vmem>>, vector<16x112xbf16>
    %c128 = arith.constant 128 : index
    %c0_40 = arith.constant 0 : index
    %31 = vector.load %arg9[%c128, %c0_40] : memref<144x128xbf16, #tpu.memory_space<vmem>>, vector<16x112xbf16>
    tpu.vector_store %arg9[%c128, %c0_40], %30 {strides = array<i32>} : memref<144x128xbf16, #tpu.memory_space<vmem>>, vector<16x112xbf16>,
    %c0_41 = arith.constant 0 : index
    %c0_42 = arith.constant 0 : index
    %32 = vector.load %arg2[%c0_41, %c0_42] : memref<16x128xbf16, #tpu.memory_space<vmem>>, vector<16x16xbf16>
    %c128_43 = arith.constant 128 : index
    %c112_44 = arith.constant 112 : index
    %33 = vector.load %arg9[%c128_43, %c112_44] : memref<144x128xbf16, #tpu.memory_space<vmem>>, vector<16x16xbf16>
    tpu.vector_store %arg9[%c128_43, %c112_44], %32 {strides = array<i32>} : memref<144x128xbf16, #tpu.memory_space<vmem>>, vector<16x16xbf16>,
    %c0_45 = arith.constant 0 : index
    %c0_46 = arith.constant 0 : index
    %34 = vector.load %arg3[%c0_45, %c0_46] : memref<32x144xbf16, #tpu.memory_space<vmem>>, vector<32x144xbf16>
    %c0_47 = arith.constant 0 : index
    %c0_48 = arith.constant 0 : index
    %35 = vector.load %arg9[%c0_47, %c0_48] : memref<144x128xbf16, #tpu.memory_space<vmem>>, vector<144x128xbf16>
    %cst = arith.constant dense<0.000000e+00> : vector<32x128xf32>
    %36 = tpu.matmul %34, %35, %cst {dimension_numbers = #tpu.dot_dimension_numbers<[1], [0], [0], [1], [0, 0, 1, 1], [], []>} : vector<32x144xbf16>, vector<144x128xbf16>, vector<32x128xf32> -> vector<32x128xf32>
    %c0_49 = arith.constant 0 : index
    %c0_50 = arith.constant 0 : index
    %37 = vector.load %arg4[%c0_49, %c0_50] : memref<32x1xf32, #tpu.memory_space<vmem>>, vector<32x1xf32>
    %38 = vector.broadcast %37 : vector<32x1xf32> to vector<32x128xf32>
    %39 = arith.addf %36, %38 : vector<32x128xf32>
    %c0_51 = arith.constant 0 : index
    %c0_52 = arith.constant 0 : index
    %40 = memref.load %arg7[%c0_51, %c0_52] : memref<1x1xf32, #tpu.memory_space<smem>>
    %cst_53 = arith.constant 0.000000e+00 : f32
    %41 = vector.broadcast %cst_53 : f32 to vector<32x128xf32>
    %42 = arith.cmpf ogt, %39, %41 : vector<32x128xf32>
    %43 = vector.broadcast %40 : f32 to vector<32x128xf32>
    %44 = arith.mulf %43, %39 : vector<32x128xf32>
    %45 = arith.select %42, %39, %44 : vector<32x128xi1>, vector<32x128xf32>
    %c0_54 = arith.constant 0 : index
    %c0_55 = arith.constant 0 : index
    %46 = vector.load %arg5[%c0_54, %c0_55] : memref<5x32xbf16, #tpu.memory_space<vmem>>, vector<5x32xbf16>
    %47 = arith.truncf %45 : vector<32x128xf32> to vector<32x128xbf16>
    %cst_56 = arith.constant dense<0.000000e+00> : vector<5x128xf32>
    %48 = tpu.matmul %46, %47, %cst_56 {dimension_numbers = #tpu.dot_dimension_numbers<[1], [0], [0], [1], [0, 0, 1, 1], [], []>} : vector<5x32xbf16>, vector<32x128xbf16>, vector<5x128xf32> -> vector<5x128xf32>
    %c0_57 = arith.constant 0 : index
    %c0_58 = arith.constant 0 : index
    %49 = vector.load %arg6[%c0_57, %c0_58] : memref<5x1xf32, #tpu.memory_space<vmem>>, vector<5x1xf32>
    %50 = vector.broadcast %49 : vector<5x1xf32> to vector<5x128xf32>
    %51 = arith.addf %48, %50 : vector<5x128xf32>
    %52 = tpu.iota {dimensions = array<i32: 0>} : vector<5x128xi32>
    %c0_i32 = arith.constant 0 : i32
    %53 = vector.broadcast %c0_i32 : i32 to vector<5x128xi32>
    %54 = arith.cmpi eq, %52, %53 : vector<5x128xi32>
    %55 = arith.negf %51 : vector<5x128xf32>
    %56 = math.exp %55 : vector<5x128xf32>
    %cst_59 = arith.constant 1.000000e+00 : f32
    %57 = vector.broadcast %cst_59 : f32 to vector<5x128xf32>
    %58 = arith.addf %57, %56 : vector<5x128xf32>
    %59 = arith.divf %57, %58 : vector<5x128xf32>
    %60 = arith.select %54, %59, %51 : vector<5x128xi1>, vector<5x128xf32>
    %c0_60 = arith.constant 0 : index
    %c0_61 = arith.constant 0 : index
    %61 = vector.load %arg8[%c0_60, %c0_61] : memref<5x128xf32, #tpu.memory_space<vmem>>, vector<5x128xf32>
    tpu.vector_store %arg8[%c0_60, %c0_61], %60 {strides = array<i32>} : memref<5x128xf32, #tpu.memory_space<vmem>>, vector<5x128xf32>,
    return
  }
  func.func @transform_0(%arg0: i32) -> (i32, i32) {
    %c0_i32 = arith.constant 0 : i32
    %c0_i32_0 = arith.constant 0 : i32
    return %c0_i32, %arg0 : i32, i32
  }
  func.func @transform_1(%arg0: i32) -> (i32, i32) {
    %c1_i32 = arith.constant 1 : i32
    %0 = arith.addi %arg0, %c1_i32 : i32
    %c1_i32_0 = arith.constant 1 : i32
    %1 = arith.muli %0, %c1_i32_0 : i32
    %c0_i32 = arith.constant 0 : i32
    %2 = arith.minsi %1, %c0_i32 : i32
    %c0_i32_1 = arith.constant 0 : i32
    %c0_i32_2 = arith.constant 0 : i32
    return %c0_i32_1, %2 : i32, i32
  }
  func.func @transform_2(%arg0: i32) -> (i32, i32) {
    %c0_i32 = arith.constant 0 : i32
    %c0_i32_0 = arith.constant 0 : i32
    %c0_i32_1 = arith.constant 0 : i32
    return %c0_i32, %c0_i32_0 : i32, i32
  }
  func.func @transform_3(%arg0: i32) -> (i32, i32) {
    %c0_i32 = arith.constant 0 : i32
    %c0_i32_0 = arith.constant 0 : i32
    %c0_i32_1 = arith.constant 0 : i32
    return %c0_i32, %c0_i32_0 : i32, i32
  }
  func.func @transform_4(%arg0: i32) -> (i32, i32) {
    %c0_i32 = arith.constant 0 : i32
    %c0_i32_0 = arith.constant 0 : i32
    %c0_i32_1 = arith.constant 0 : i32
    return %c0_i32, %c0_i32_0 : i32, i32
  }
  func.func @transform_5(%arg0: i32) -> (i32, i32) {
    %c0_i32 = arith.constant 0 : i32
    %c0_i32_0 = arith.constant 0 : i32
    %c0_i32_1 = arith.constant 0 : i32
    return %c0_i32, %c0_i32_0 : i32, i32
  }
  func.func @transform_6(%arg0: i32) -> (i32, i32) {
    %c0_i32 = arith.constant 0 : i32
    %c0_i32_0 = arith.constant 0 : i32
    %c0_i32_1 = arith.constant 0 : i32
    return %c0_i32, %c0_i32_0 : i32, i32
  }
  func.func @transform_7(%arg0: i32) -> (i32, i32) {
    %c0_i32 = arith.constant 0 : i32
    %c0_i32_0 = arith.constant 0 : i32
    return %c0_i32, %arg0 : i32, i32
  }
}

</mosaic_0001>

<llo_original>
// kernel: pnet_forward.4
$region0: #{pnet_forward.4}
  #allocation0 [shape = 'u32[]', space=smem, size = 0x4, offset = 0x4, fixed_abs, tag = 'smem constant byte address 0x4 - core index']
  #allocation1 [shape = 'u32[144,128]{1,0:T(1,128)}', space=vmem, size = 0x12000, scoped, tag = 'internal scratch']
  #allocation2 [shape = 'bf16[90,128]{1,0:T(8,128)(2,1)}', space=vmem, size = 0x6000, scoped, tag = 'scratch operand']
  #allocation3 [shape = 'f32[1,1]{1,0:T(1,128)S(6)}', space=smem, size = 0x200, scoped, tag = 'scoped memory for pnet_forward.4']
  %s0 = inlined_call_operand.vmem [shape: bf16[10,98], index: 0, kind: input, shape index: {}, may-alias: {0,1}]
  %s1 = inlined_call_operand.vmem [shape: bf16[10,98], index: 1, kind: input, shape index: {}, may-alias: {0,1}]
  %s2 = inlined_call_operand.vmem [shape: bf16[16,90], index: 2, kind: input, shape index: {}]
  %s3 = inlined_call_operand.vmem [shape: f32[16,1], index: 3, kind: input, shape index: {}]
  %s4 = inlined_call_operand.<no memory space> [shape: f32[1,1], index: 4, kind: input, shape index: {}]
  %s5 = inlined_call_operand.vmem [shape: bf16[16,98], index: 5, kind: output, shape index: {}]
  %s6 = sld [smem:[#allocation0]]
  $region30: #{pnet_forward.4} parent=0
    _
  %s8 = ssub.s32 1, %s6
  %s9 = scalar_select 0, %s8, %s6
  %10 = sst [smem:[#allocation3]] %s4
  // Predicated region
  $region2: #{pnet_forward.4} parent=0 // pred_check
    _
  $region3: #{pnet_forward.4} parent=0 // pred_check_branch
    %12 = sbr.rel (0) target = $region5
  $region4: #{pnet_forward.4} parent=0 // pred_region
    _
  $region5: #{pnet_forward.4} parent=0 // pred_fallthru
    _
  // Predicated region
  $region6: #{pnet_forward.4} parent=0 // pred_check
    _
  $region7: #{pnet_forward.4} parent=0 // pred_check_branch
    %14 = sbr.rel (0) target = $region9
  $region8: #{pnet_forward.4} parent=0 // pred_region
    %s15 = sadd.s32 0, 1
    %p16 = scmp.lt.s32.totalorder %s15, 0
    %s17 = scalar_select %p16, %s15, 0
    %p18 = scmp.lt.s32.totalorder %s17, 0
    %s19 = scalar_select %p18, %s17, 0
    %s20 = smul.addr %s19, 4
    %s21 = scalar_lea.vmem %s1, %s20
    %s22 = sadd.s32 0, 1
    %p23 = scmp.lt.s32.totalorder %s22, 0
    %s24 = scalar_select %p23, %s22, 0
  $region9: #{pnet_forward.4} parent=0 // pred_fallthru
    _
  // Predicated region
  $region10: #{pnet_forward.4} parent=0 // pred_check
    _
  $region11: #{pnet_forward.4} parent=0 // pred_check_branch
    %26 = sbr.rel (0) target = $region13
  $region12: #{pnet_forward.4} parent=0 // pred_region
    _
  $region13: #{pnet_forward.4} parent=0 // pred_fallthru
    _
  // Predicated region
  $region14: #{pnet_forward.4} parent=0 // pred_check
    _
  $region15: #{pnet_forward.4} parent=0 // pred_check_branch
    %28 = sbr.rel (0) target = $region17
  $region16: #{pnet_forward.4} parent=0 // pred_region
    _
  $region17: #{pnet_forward.4} parent=0 // pred_fallthru
    _
  // Predicated region
  $region18: #{pnet_forward.4} parent=0 // pred_check
    _
  $region19: #{pnet_forward.4} parent=0 // pred_check_branch
    %30 = sbr.rel (0) target = $region21
  $region20: #{pnet_forward.4} parent=0 // pred_region
    _
  $region21: #{pnet_forward.4} parent=0 // pred_fallthru
    _
  %s31 = sadd.s32 0, 1
  %p32 = scmp.lt.s32.totalorder %s31, 0
  %s33 = scalar_select %p32, %s31, 0
  %p34 = scmp.lt.s32.totalorder %s33, 0
  %s35 = scalar_select %p34, %s33, 0
  %s36 = smul.addr %s35, 4
  %s37 = scalar_lea.vmem %s1, %s36
  %s38 = sadd.s32 0, 1
  %p39 = scmp.lt.s32.totalorder %s38, 0
  %s40 = scalar_select %p39, %s38, 0
  %p41 = scmp.lt.s32.totalorder %s40, 0
  %s42 = scalar_select %p41, %s40, 0
  %s43 = smul.addr %s42, 4
  %s44 = scalar_lea.vmem %s1, %s43
  %s45 = sadd.s32 0, 1
  %p46 = scmp.lt.s32.totalorder %s45, 0
  %s47 = scalar_select %p46, %s45, 0
  %v49 = vld [vmem:[%s0] sm:$0xf]
  %v50 = vld [vmem:[%s0 + $0x4] sm:$0x1]
  %51 = vst [vmem:[#allocation2] sm:$0xf] %v49
  %52 = vst [vmem:[#allocation2 + $0x4] sm:$0x1] %v50
  %v53 = vld [vmem:[%s0] sm:$0xf]
  %v54 = vld [vmem:[%s0 + $0x4] sm:$0x1]
  %vm57 = vcmask 1040384
  %vm58 = vcmask 1044484
  %vm59 = vmor %vm57, %vm58
  %v60 = vrot.slane %v53, 7
  %v61 = vrot.slane %v60, 4
  %v62 = vrot.slane %v54, 7
  %v63 = vsel %vm59, %v61, %v62
  %64 = vrot.lane.b32.xlu0 %v60, 127
  %v65 = vpop.permute.xlu0 %64
  %66 = vrot.lane.b32.xlu0 %v63, 127
  %v67 = vpop.permute.xlu0 %66
  %vm70 = vcmask 1035265
  %71 = vst.msk [vmem:[#allocation2 + $0x4] sm:$0xe] %vm70, %v65
  %vm72 = vcmask 1033216
  %73 = vst.msk [vmem:[#allocation2 + $0x8] sm:$0x3] %vm72, %v67
  %v74 = vld [vmem:[%s44] sm:$0xf]
  %v75 = vld [vmem:[%s44 + $0x4] sm:$0x1]
  %v78 = vrot.slane %v74, 7
  %v79 = vrot.slane %v78, 4
  %v80 = vrot.slane %v75, 7
  %v81 = vsel %vm59, %v79, %v80
  %82 = vrot.lane.b32.xlu0 %v78, 127
  %v83 = vpop.permute.xlu0 %82
  %84 = vrot.lane.b32.xlu0 %v81, 127
  %v85 = vpop.permute.xlu0 %84
  %vm88 = vcmask 1044473
  %89 = vst.msk [vmem:[#allocation2 + $0x4] sm:$0xe] %vm88, %v83
  %vm90 = vcmask 1042424
  %91 = vst.msk [vmem:[#allocation2 + $0x8] sm:$0x3] %vm90, %v85
  %v92 = vld [vmem:[%s0] sm:$0xf]
  %v93 = vld [vmem:[%s0 + $0x4] sm:$0x1]
  %vm96 = vcmask 1041408
  %vm97 = vcmask 1045508
  %vm98 = vmor %vm96, %vm97
  %v99 = vrot.slane %v92, 6
  %v100 = vrot.slane %v99, 4
  %v101 = vrot.slane %v93, 6
  %v102 = vsel %vm98, %v100, %v101
  %103 = vrot.lane.b32.xlu0 %v99, 126
  %v104 = vpop.permute.xlu0 %103
  %105 = vrot.lane.b32.xlu0 %v102, 126
  %v106 = vpop.permute.xlu0 %105
  %vm109 = vcmask 1027074
  %110 = vst.msk [vmem:[#allocation2 + $0x8] sm:$0xc] %vm109, %v104
  %vm111 = vcmask 1026048
  %112 = vst.msk [vmem:[#allocation2 + $0xc] sm:$0x7] %vm111, %v106
  %v113 = vld [vmem:[%s44] sm:$0xf]
  %v114 = vld [vmem:[%s44 + $0x4] sm:$0x1]
  %v117 = vrot.slane %v113, 6
  %v118 = vrot.slane %v117, 4
  %v119 = vrot.slane %v114, 6
  %v120 = vsel %vm98, %v118, %v119
  %121 = vrot.lane.b32.xlu0 %v117, 126
  %v122 = vpop.permute.xlu0 %121
  %123 = vrot.lane.b32.xlu0 %v120, 126
  %v124 = vpop.permute.xlu0 %123
  %vm127 = vcmask 1044466
  %128 = vst.msk [vmem:[#allocation2 + $0x8] sm:$0xc] %vm127, %v122
  %vm129 = vcmask 1043440
  %130 = vst.msk [vmem:[#allocation2 + $0xc] sm:$0x7] %vm129, %v124
  %v131 = vld [vmem:[%s0] sm:$0xf]
  %v132 = vld [vmem:[%s0 + $0x4] sm:$0x1]
  %vm135 = vcmask 1042432
  %vm136 = vcmask 1046532
  %vm137 = vmor %vm135, %vm136
  %v138 = vrot.slane %v131, 5
  %v139 = vrot.slane %v138, 4
  %v140 = vrot.slane %v132, 5
  %v141 = vsel %vm137, %v139, %v140
  %142 = vrot.lane.b32.xlu0 %v138, 121
  %v143 = vpop.permute.xlu0 %142
  %144 = vrot.lane.b32.xlu0 %v141, 121
  %v145 = vpop.permute.xlu0 %144
  %vm148 = vcmask 986115
  %149 = vst.msk [vmem:[#allocation2 + $0xc] sm:$0x8] %vm148, %v143
  %vm150 = vcmask 986112
  %151 = vst.msk [vmem:[#allocation2 + $0x10] sm:$0xf] %vm150, %v145
  %v152 = vld [vmem:[%s44] sm:$0xf]
  %v153 = vld [vmem:[%s44 + $0x4] sm:$0x1]
  %v156 = vrot.slane %v152, 5
  %v157 = vrot.slane %v156, 4
  %v158 = vrot.slane %v153, 5
  %v159 = vsel %vm137, %v157, %v158
  %160 = vrot.lane.b32.xlu0 %v156, 121
  %v161 = vpop.permute.xlu0 %160
  %162 = vrot.lane.b32.xlu0 %v159, 121
  %v163 = vpop.permute.xlu0 %162
  %vm166 = vcmask 1044427
  %167 = vst.msk [vmem:[#allocation2 + $0xc] sm:$0x8] %vm166, %v161
  %vm168 = vcmask 1044424
  %169 = vst.msk [vmem:[#allocation2 + $0x10] sm:$0xf] %vm168, %v163
  %v170 = vld [vmem:[%s0] sm:$0xf]
  %v171 = vld [vmem:[%s0 + $0x4] sm:$0x1]
  %174 = vrot.lane.b32.xlu0 %v170, 120
  %v175 = vpop.permute.xlu0 %174
  %176 = vrot.lane.b32.xlu0 %v171, 120
  %v177 = vpop.permute.xlu0 %176
  %vm180 = vcmask 977920
  %181 = vst.msk [vmem:[#allocation2 + $0x14] sm:$0xf] %vm180, %v175
  %vm182 = vcmask 974848
  %183 = vst.msk [vmem:[#allocation2 + $0x18] sm:$0x1] %vm182, %v177
  %v184 = vld [vmem:[%s44] sm:$0xf]
  %v185 = vld [vmem:[%s44 + $0x4] sm:$0x1]
  %188 = vrot.lane.b32.xlu0 %v184, 120
  %v189 = vpop.permute.xlu0 %188
  %190 = vrot.lane.b32.xlu0 %v185, 120
  %v191 = vpop.permute.xlu0 %190
  %vm194 = vcmask 1044416
  %195 = vst.msk [vmem:[#allocation2 + $0x14] sm:$0xf] %vm194, %v189
  %vm196 = vcmask 1041344
  %197 = vst.msk [vmem:[#allocation2 + $0x18] sm:$0x1] %vm196, %v191
  %v198 = vld [vmem:[%s0] sm:$0xf]
  %v199 = vld [vmem:[%s0 + $0x4] sm:$0x1]
  %v202 = vrot.slane %v198, 7
  %v203 = vrot.slane %v202, 4
  %v204 = vrot.slane %v199, 7
  %v205 = vsel %vm59, %v203, %v204
  %206 = vrot.lane.b32.xlu0 %v202, 119
  %v207 = vpop.permute.xlu0 %206
  %208 = vrot.lane.b32.xlu0 %v205, 119
  %v209 = vpop.permute.xlu0 %208
  %vm212 = vcmask 969729
  %213 = vst.msk [vmem:[#allocation2 + $0x18] sm:$0xe] %vm212, %v207
  %vm214 = vcmask 967680
  %215 = vst.msk [vmem:[#allocation2 + $0x1c] sm:$0x3] %vm214, %v209
  %v216 = vld [vmem:[%s44] sm:$0xf]
  %v217 = vld [vmem:[%s44 + $0x4] sm:$0x1]
  %v220 = vrot.slane %v216, 7
  %v221 = vrot.slane %v220, 4
  %v222 = vrot.slane %v217, 7
  %v223 = vsel %vm59, %v221, %v222
  %224 = vrot.lane.b32.xlu0 %v220, 119
  %v225 = vpop.permute.xlu0 %224
  %226 = vrot.lane.b32.xlu0 %v223, 119
  %v227 = vpop.permute.xlu0 %226
  %vm230 = vcmask 1044409
  %231 = vst.msk [vmem:[#allocation2 + $0x18] sm:$0xe] %vm230, %v225
  %vm232 = vcmask 1042360
  %233 = vst.msk [vmem:[#allocation2 + $0x1c] sm:$0x3] %vm232, %v227
  %v234 = vld [vmem:[%s0] sm:$0xf]
  %v235 = vld [vmem:[%s0 + $0x4] sm:$0x1]
  %v238 = vrot.slane %v234, 6
  %v239 = vrot.slane %v238, 4
  %v240 = vrot.slane %v235, 6
  %v241 = vsel %vm98, %v239, %v240
  %242 = vrot.lane.b32.xlu0 %v238, 114
  %v243 = vpop.permute.xlu0 %242
  %244 = vrot.lane.b32.xlu0 %v241, 114
  %v245 = vpop.permute.xlu0 %244
  %vm248 = vcmask 928770
  %249 = vst.msk [vmem:[#allocation2 + $0x1c] sm:$0xc] %vm248, %v243
  %vm250 = vcmask 927744
  %251 = vst.msk [vmem:[#allocation2 + $0x20] sm:$0x7] %vm250, %v245
  %v252 = vld [vmem:[%s44] sm:$0xf]
  %v253 = vld [vmem:[%s44 + $0x4] sm:$0x1]
  %v256 = vrot.slane %v252, 6
  %v257 = vrot.slane %v256, 4
  %v258 = vrot.slane %v253, 6
  %v259 = vsel %vm98, %v257, %v258
  %260 = vrot.lane.b32.xlu0 %v256, 114
  %v261 = vpop.permute.xlu0 %260
  %262 = vrot.lane.b32.xlu0 %v259, 114
  %v263 = vpop.permute.xlu0 %262
  %vm266 = vcmask 1044370
  %267 = vst.msk [vmem:[#allocation2 + $0x1c] sm:$0xc] %vm266, %v261
  %vm268 = vcmask 1043344
  %269 = vst.msk [vmem:[#allocation2 + $0x20] sm:$0x7] %vm268, %v263
  %v270 = vld [vmem:[%s0] sm:$0xf]
  %v271 = vld [vmem:[%s0 + $0x4] sm:$0x1]
  %v274 = vrot.slane %v270, 5
  %v275 = vrot.slane %v274, 4
  %v276 = vrot.slane %v271, 5
  %v277 = vsel %vm137, %v275, %v276
  %278 = vrot.lane.b32.xlu0 %v274, 113
  %v279 = vpop.permute.xlu0 %278
  %280 = vrot.lane.b32.xlu0 %v277, 113
  %v281 = vpop.permute.xlu0 %280
  %vm284 = vcmask 920579
  %285 = vst.msk [vmem:[#allocation2 + $0x20] sm:$0x8] %vm284, %v279
  %vm286 = vcmask 920576
  %287 = vst.msk [vmem:[#allocation2 + $0x24] sm:$0xf] %vm286, %v281
  %v288 = vld [vmem:[%s44] sm:$0xf]
  %v289 = vld [vmem:[%s44 + $0x4] sm:$0x1]
  %v292 = vrot.slane %v288, 5
  %v293 = vrot.slane %v292, 4
  %v294 = vrot.slane %v289, 5
  %v295 = vsel %vm137, %v293, %v294
  %296 = vrot.lane.b32.xlu0 %v292, 113
  %v297 = vpop.permute.xlu0 %296
  %298 = vrot.lane.b32.xlu0 %v295, 113
  %v299 = vpop.permute.xlu0 %298
  %vm302 = vcmask 1044363
  %303 = vst.msk [vmem:[#allocation2 + $0x20] sm:$0x8] %vm302, %v297
  %vm304 = vcmask 1044360
  %305 = vst.msk [vmem:[#allocation2 + $0x24] sm:$0xf] %vm304, %v299
  %v306 = vld [vmem:[%s0] sm:$0xf]
  %v307 = vld [vmem:[%s0 + $0x4] sm:$0x1]
  %310 = vrot.lane.b32.xlu0 %v306, 112
  %v311 = vpop.permute.xlu0 %310
  %312 = vrot.lane.b32.xlu0 %v307, 112
  %v313 = vpop.permute.xlu0 %312
  %vm316 = vcmask 912384
  %317 = vst.msk [vmem:[#allocation2 + $0x28] sm:$0xf] %vm316, %v311
  %vm318 = vcmask 909312
  %319 = vst.msk [vmem:[#allocation2 + $0x2c] sm:$0x1] %vm318, %v313
  %v320 = vld [vmem:[%s44] sm:$0xf]
  %v321 = vld [vmem:[%s44 + $0x4] sm:$0x1]
  %324 = vrot.lane.b32.xlu0 %v320, 112
  %v325 = vpop.permute.xlu0 %324
  %326 = vrot.lane.b32.xlu0 %v321, 112
  %v327 = vpop.permute.xlu0 %326
  %vm330 = vcmask 1044352
  %331 = vst.msk [vmem:[#allocation2 + $0x28] sm:$0xf] %vm330, %v325
  %vm332 = vcmask 1041280
  %333 = vst.msk [vmem:[#allocation2 + $0x2c] sm:$0x1] %vm332, %v327
  %v334 = vld [vmem:[%s2] sm:$0xf]
  %v335 = vld [vmem:[%s2 + $0x4] sm:$0xf]
  %v336 = vld [vmem:[#allocation2] sm:$0xf]
  %v337 = vld [vmem:[#allocation2 + $0x4] sm:$0xf]
  %v338 = vld [vmem:[#allocation2 + $0x8] sm:$0xf]
  %v339 = vld [vmem:[#allocation2 + $0xc] sm:$0xf]
  %v340 = vld [vmem:[#allocation2 + $0x10] sm:$0xf]
  %v341 = vld [vmem:[#allocation2 + $0x14] sm:$0xf]
  %v342 = vld [vmem:[#allocation2 + $0x18] sm:$0xf]
  %v343 = vld [vmem:[#allocation2 + $0x1c] sm:$0xf]
  %v344 = vld [vmem:[#allocation2 + $0x20] sm:$0xf]
  %v345 = vld [vmem:[#allocation2 + $0x24] sm:$0xf]
  %v346 = vld [vmem:[#allocation2 + $0x28] sm:$0xf]
  %v347 = vld [vmem:[#allocation2 + $0x2c] sm:$0x1]
  %v348 = vld [vmem:[%s3] sm:$0xff]
  %v349 = vld [vmem:[%s3 + $0x8] sm:$0xff]
  %351 = vset.pattern.permute.xlu0 0
  %352 = vperm.xlu0 %351, %v348
  %v353 = vpop.permute.xlu0 %352
  %356 = vset.pattern.permute.xlu0 0
  %357 = vperm.xlu0 %356, %v349
  %v358 = vpop.permute.xlu0 %357
  %v362 = vunpack.c.l.b16 %v334
  %v363 = vunpack.c.l.b16 %v335
  %v364 = vpack.c.b16 %v363, %v362
  %v377 = vunpack.c.l.b16 %v336
  %v378 = vunpack.c.l.b16 %v337
  %v379 = vunpack.c.l.b16 %v338
  %v380 = vunpack.c.l.b16 %v339
  %v381 = vunpack.c.l.b16 %v340
  %v382 = vunpack.c.l.b16 %v341
  %v383 = vunpack.c.l.b16 %v342
  %v384 = vunpack.c.l.b16 %v343
  %v385 = vunpack.c.l.b16 %v344
  %v386 = vunpack.c.l.b16 %v345
  %v387 = vunpack.c.l.b16 %v346
  %v388 = vunpack.c.l.b16 %v347
  %v389 = vpack.c.b16 %v378, %v377
  %v390 = vpack.c.b16 %v380, %v379
  %v391 = vpack.c.b16 %v382, %v381
  %v392 = vpack.c.b16 %v384, %v383
  %v393 = vpack.c.b16 %v386, %v385
  %v394 = vpack.c.b16 %v388, %v387
  %vm400 = vcmask 736256
  %v402 = vsel %vm400, %v364, 0
  %vm404 = vcmask 1044480
  %v406 = vsel %vm404, %v394, 0
  %408 = vmatprep.subr.bf16.mxu0 0
  %409 = vmatpush1.bf16.msra.mxu0 0
  %410 = vmatprep.subr.bf16.mxu0 0
  %411 = vmatpush1.bf16.msra.mxu0 0
  %412 = vmatprep.subr.bf16.mxu0 0
  %413 = vmatpush1.bf16.msra.mxu0 %v406
  %414 = vmatprep.subr.bf16.mxu0 0
  %415 = vmatpush1.bf16.msra.mxu0 %v393
  %416 = vmatprep.subr.bf16.mxu0 0
  %417 = vmatpush1.bf16.msra.mxu0 %v392
  %418 = vmatprep.subr.bf16.mxu0 0
  %419 = vmatpush1.bf16.msra.mxu0 %v391
  %420 = vmatprep.subr.bf16.mxu0 0
  %421 = vmatpush1.bf16.msra.mxu0 %v390
  %422 = vmatprep.subr.bf16.mxu0 0
  %423 = vmatpush1.bf16.msra.mxu0 %v389
  %424 = vmatprep.subr.bf16.mxu0 0
  %425 = vmatpush2.bf16.msra.mxu0 0
  %426 = vmatprep.subr.bf16.mxu0 0
  %427 = vmatpush2.bf16.msra.mxu0 0
  %428 = vmatprep.subr.bf16.mxu0 0
  %429 = vmatpush2.bf16.msra.mxu0 0
  %430 = vmatprep.subr.bf16.mxu0 0
  %431 = vmatpush2.bf16.msra.mxu0 0
  %432 = vmatprep.subr.bf16.mxu0 0
  %433 = vmatpush2.bf16.msra.mxu0 0
  %434 = vmatprep.subr.bf16.mxu0 0
  %435 = vmatpush2.bf16.msra.mxu0 0
  %436 = vmatprep.subr.bf16.mxu0 0
  %437 = vmatpush2.bf16.msra.mxu0 0
  %438 = vmatprep.subr.bf16.mxu0 0
  %439 = vmatpush2.bf16.msra.mxu0 0
  %440 = vmatprep.mubr.bf16.mxu0 0
  %441 = vmatmul.mubr.bf16.gmra.mxu0 %v402
  %v442 = vpop.f32.mrf.mxu0
  %v443 = vadd.f32 %v353, %v442
  %v444 = vpop.f32.mrf.mxu0
  %v445 = vpop.f32.mrf.mxu0
  %v446 = vadd.f32 %v358, %v445
  %v447 = vpop.f32.mrf.mxu0
  %448 = vdwg.mxu0
  %s449 = sld [smem:[#allocation3]]
  %vm450 = vcmp.gt.f32.partialorder %v443, 0.0
  %vm451 = vcmp.gt.f32.partialorder %v446, 0.0
  %v452 = vstv %s449
  %v453 = vmul.f32 %v452, %v443
  %v454 = vmul.f32 %v452, %v446
  %v455 = vsel %vm450, %v443, %v453
  %v456 = vsel %vm451, %v446, %v454
  %v457 = vpack.c.bf16 %v456, %v455
  %v459 = vunpack.c.l.b16 %v457
  %v460 = vunpack.c.h.b16 %v457
  %v461 = vpack.c.b16 %v459, %v459
  %v462 = vpack.c.b16 %v460, %v460
  %465 = vst [vmem:[%s5] sm:$0xf] %v461
  %466 = vst [vmem:[%s5 + $0x4] sm:$0xf] %v462
  // Predicated region
  $region22: #{pnet_forward.4} parent=0 // pred_check
    _
  $region23: #{pnet_forward.4} parent=0 // pred_check_branch
    %468 = sbr.rel (0) target = $region25
  $region24: #{pnet_forward.4} parent=0 // pred_region
    _
  $region25: #{pnet_forward.4} parent=0 // pred_fallthru
    _
  // Predicated region
  $region26: #{pnet_forward.4} parent=0 // pred_check
    _
  $region27: #{pnet_forward.4} parent=0 // pred_check_branch
    %470 = sbr.rel (0) target = $region29
  $region28: #{pnet_forward.4} parent=0 // pred_region
    _
  $region29: #{pnet_forward.4} parent=0 // pred_fallthru
    _

// kernel: pnet_forward.3
$region0: #{pnet_forward.3}
  #allocation0 [shape = 'u32[]', space=smem, size = 0x4, offset = 0x4, fixed_abs, tag = 'smem constant byte address 0x4 - core index']
  #allocation1 [shape = 'u32[144,128]{1,0:T(1,128)}', space=vmem, size = 0x12000, scoped, tag = 'internal scratch']
  #allocation2 [shape = 'bf16[27,256]{1,0:T(8,128)(2,1)}', space=vmem, size = 0x4000, scoped, tag = 'scratch operand']
  #allocation3 [shape = 'f32[1,1]{1,0:T(1,128)S(6)}', space=smem, size = 0x200, scoped, tag = 'scoped memory for pnet_forward.3']
  %s0 = inlined_call_operand.vmem [shape: bf16[3,512], index: 0, kind: input, shape index: {}, may-alias: {0,1}]
  %s1 = inlined_call_operand.vmem [shape: bf16[3,512], index: 1, kind: input, shape index: {}, may-alias: {0,1}]
  %s2 = inlined_call_operand.vmem [shape: bf16[10,27], index: 2, kind: input, shape index: {}]
  %s3 = inlined_call_operand.vmem [shape: f32[10,1], index: 3, kind: input, shape index: {}]
  %s4 = inlined_call_operand.<no memory space> [shape: f32[1,1], index: 4, kind: input, shape index: {}]
  %s5 = inlined_call_operand.vmem [shape: bf16[10,512], index: 5, kind: output, shape index: {}]
  %s6 = sld [smem:[#allocation0]]
  $region87: #{pnet_forward.3} parent=0
    _
  %s8 = ssub.s32 1, %s6
  %s9 = scalar_select 0, %s8, %s6
  %10 = sst [smem:[#allocation3]] %s4
  $region1: #{pnet_forward.3} parent=0
    #allocation4 [shape = 'u8[16384]{0}', space=vmem, size = 0x4000, scoped, tag = 'output window, operand 0']
    loop: start=0, step=1, limit=4
    $region2: #{pnet_forward.3} parent=1 // loop_pre_header
      _
    $region3: #{pnet_forward.3} parent=1 // loop_header
      %s12 = sphi 0, %s16
      %p13 = scmp.ge.s32.totalorder %s12, 4
      %s22 = sphi 0, %s24
      %s25 = sphi 0, %s22
      %s26 = sphi 0, %s25
      %s42 = sphi 0, %s26
      %s56 = sphi 0, %s58
      %s59 = sphi 0, %s56
      %s60 = sphi 0, %s59
      %s76 = sphi 0, %s60
      %s80 = sphi 0, %s80
      %s82 = sphi 0, %s80
      %s83 = sphi 0, %s82
      %s97 = sphi 0, %s83
      %s101 = sphi 0, %s101
      %s103 = sphi 0, %s101
      %s104 = sphi 0, %s103
      %s118 = sphi 0, %s104
      %s122 = sphi 0, %s122
      %s124 = sphi 0, %s122
      %s125 = sphi 0, %s124
      %s139 = sphi 0, %s125
      %s145 = sphi 0, %s147
      %s148 = sphi 0, %s145
      %s149 = sphi 0, %s148
      %s165 = sphi 0, %s149
    $region4: #{pnet_forward.3} parent=1 // loop_header_branch
      %15 = sbr.rel (%p13) target = $region8
    $region5: #{pnet_forward.3} parent=1 // loop_body
      %s17 = ssub.s32 %s12, 1
      %s18 = ssub.s32 %s12, 2
      %s19 = sadd.s32 %s12, 1
      %s20 = ssub.s32 %s12, %s19
      %p21 = scmp.eq.s32.totalorder %s20, 0
      %s23 = sadd.s32 %s22, 1
      %s24 = scalar_select %p21, %s22, %s23
      %p27 = pneg %p21
      %p28 = scmp.eq.s32.totalorder %s12, 1
      %p29 = por %p27, %p28
      %p30 = scmp.ne.s32.totalorder %s22, %s25
      %p31 = scmp.eq.s32.totalorder %s12, 0
      %p32 = por %p30, %p31
      %p33 = scmp.ne.s32.totalorder %s22, %s25
      %p34 = scmp.eq.s32.totalorder %s17, 1
      %p35 = por %p33, %p34
      %p36 = scmp.ne.s32.totalorder %s25, %s26
      %p37 = scmp.eq.s32.totalorder %s17, 0
      %p38 = por %p36, %p37
      %p39 = scmp.ne.s32.totalorder %s25, %s26
      %p40 = scmp.eq.s32.totalorder %s18, 1
      %p41 = por %p39, %p40
      %p43 = scmp.ne.s32.totalorder %s26, %s42
      %p44 = scmp.eq.s32.totalorder %s18, 0
      %p45 = por %p43, %p44
      %s46 = sadd.s32 %s12, 1
      %s47 = smul.u32 %s46, 2
      %p48 = scmp.lt.s32.totalorder %s47, 3
      %s49 = scalar_select %p48, %s47, 3
      %s50 = sadd.s32 %s19, 1
      %s51 = smul.u32 %s50, 2
      %p52 = scmp.lt.s32.totalorder %s51, 3
      %s53 = scalar_select %p52, %s51, 3
      %s54 = ssub.s32 %s49, %s53
      %p55 = scmp.eq.s32.totalorder %s54, 0
      %s57 = sadd.s32 %s56, 1
      %s58 = scalar_select %p55, %s56, %s57
      %p61 = pneg %p55
      %p62 = scmp.eq.s32.totalorder %s12, 1
      %p63 = por %p61, %p62
      %p64 = scmp.ne.s32.totalorder %s56, %s59
      %p65 = scmp.eq.s32.totalorder %s12, 0
      %p66 = por %p64, %p65
      %p67 = scmp.ne.s32.totalorder %s56, %s59
      %p68 = scmp.eq.s32.totalorder %s17, 1
      %p69 = por %p67, %p68
      %p70 = scmp.ne.s32.totalorder %s59, %s60
      %p71 = scmp.eq.s32.totalorder %s17, 0
      %p72 = por %p70, %p71
      %p73 = scmp.ne.s32.totalorder %s59, %s60
      %p74 = scmp.eq.s32.totalorder %s18, 1
      %p75 = por %p73, %p74
      %p77 = scmp.ne.s32.totalorder %s60, %s76
      %p78 = scmp.eq.s32.totalorder %s18, 0
      %p79 = por %p77, %p78
      %s81 = sadd.s32 %s80, 1
      %p84 = scmp.eq.s32.totalorder %s12, 1
      %p85 = scmp.ne.s32.totalorder %s80, %s82
      %p86 = scmp.eq.s32.totalorder %s12, 0
      %p87 = por %p85, %p86
      %p88 = scmp.ne.s32.totalorder %s80, %s82
      %p89 = scmp.eq.s32.totalorder %s17, 1
      %p90 = por %p88, %p89
      %p91 = scmp.ne.s32.totalorder %s82, %s83
      %p92 = scmp.eq.s32.totalorder %s17, 0
      %p93 = por %p91, %p92
      %p94 = scmp.ne.s32.totalorder %s82, %s83
      %p95 = scmp.eq.s32.totalorder %s18, 1
      %p96 = por %p94, %p95
      %p98 = scmp.ne.s32.totalorder %s83, %s97
      %p99 = scmp.eq.s32.totalorder %s18, 0
      %p100 = por %p98, %p99
      %s102 = sadd.s32 %s101, 1
      %p105 = scmp.eq.s32.totalorder %s12, 1
      %p106 = scmp.ne.s32.totalorder %s101, %s103
      %p107 = scmp.eq.s32.totalorder %s12, 0
      %p108 = por %p106, %p107
      %p109 = scmp.ne.s32.totalorder %s101, %s103
      %p110 = scmp.eq.s32.totalorder %s17, 1
      %p111 = por %p109, %p110
      %p112 = scmp.ne.s32.totalorder %s103, %s104
      %p113 = scmp.eq.s32.totalorder %s17, 0
      %p114 = por %p112, %p113
      %p115 = scmp.ne.s32.totalorder %s103, %s104
      %p116 = scmp.eq.s32.totalorder %s18, 1
      %p117 = por %p115, %p116
      %p119 = scmp.ne.s32.totalorder %s104, %s118
      %p120 = scmp.eq.s32.totalorder %s18, 0
      %p121 = por %p119, %p120
      %s123 = sadd.s32 %s122, 1
      %p126 = scmp.eq.s32.totalorder %s12, 1
      %p127 = scmp.ne.s32.totalorder %s122, %s124
      %p128 = scmp.eq.s32.totalorder %s12, 0
      %p129 = por %p127, %p128
      %p130 = scmp.ne.s32.totalorder %s122, %s124
      %p131 = scmp.eq.s32.totalorder %s17, 1
      %p132 = por %p130, %p131
      %p133 = scmp.ne.s32.totalorder %s124, %s125
      %p134 = scmp.eq.s32.totalorder %s17, 0
      %p135 = por %p133, %p134
      %p136 = scmp.ne.s32.totalorder %s124, %s125
      %p137 = scmp.eq.s32.totalorder %s18, 1
      %p138 = por %p136, %p137
      %p140 = scmp.ne.s32.totalorder %s125, %s139
      %p141 = scmp.eq.s32.totalorder %s18, 0
      %p142 = por %p140, %p141
      %s143 = ssub.s32 %s12, %s19
      %p144 = scmp.eq.s32.totalorder %s143, 0
      %s146 = sadd.s32 %s145, 1
      %s147 = scalar_select %p144, %s145, %s146
      %p150 = pneg %p144
      %p151 = scmp.eq.s32.totalorder %s12, 1
      %p152 = por %p150, %p151
      %p153 = scmp.ne.s32.totalorder %s145, %s148
      %p154 = scmp.eq.s32.totalorder %s12, 0
      %p155 = por %p153, %p154
      %p156 = scmp.ne.s32.totalorder %s145, %s148
      %p157 = scmp.eq.s32.totalorder %s17, 1
      %p158 = por %p156, %p157
      %p159 = scmp.ne.s32.totalorder %s148, %s149
      %p160 = scmp.eq.s32.totalorder %s17, 0
      %p161 = por %p159, %p160
      %p162 = scmp.ne.s32.totalorder %s148, %s149
      %p163 = scmp.eq.s32.totalorder %s18, 1
      %p164 = por %p162, %p163
      %p166 = scmp.ne.s32.totalorder %s149, %s165
      %p167 = scmp.eq.s32.totalorder %s18, 0
      %p168 = por %p166, %p167
      %p169 = scmp.le.s32.totalorder 1, %s12
      %p170 = scmp.lt.s32.totalorder %s12, 3
      %p171 = pnand %p169, %p170
      %p172 = pneg %p171
      // Predicated region
      $region9: #{pnet_forward.3} parent=5 // pred_check
        _
      $region10: #{pnet_forward.3} parent=5 // pred_check_branch
        %174 = sbr.rel (%p171) target = $region12
      $region11: #{pnet_forward.3} parent=5 // pred_region
        %s175 = ssub.s32 %s12, 1
        // Predicated region
        $region13: #{pnet_forward.3} parent=11 // pred_check
          %p176 = pneg %p93
        $region14: #{pnet_forward.3} parent=11 // pred_check_branch
          %178 = sbr.rel (%p176) target = $region16
        $region15: #{pnet_forward.3} parent=11 // pred_region
          _
        $region16: #{pnet_forward.3} parent=11 // pred_fallthru
          _
        // Predicated region
        $region17: #{pnet_forward.3} parent=11 // pred_check
          %p179 = pneg %p114
        $region18: #{pnet_forward.3} parent=11 // pred_check_branch
          %181 = sbr.rel (%p179) target = $region20
        $region19: #{pnet_forward.3} parent=11 // pred_region
          _
        $region20: #{pnet_forward.3} parent=11 // pred_fallthru
          _
        // Predicated region
        $region21: #{pnet_forward.3} parent=11 // pred_check
          %p182 = pneg %p135
        $region22: #{pnet_forward.3} parent=11 // pred_check_branch
          %184 = sbr.rel (%p182) target = $region24
        $region23: #{pnet_forward.3} parent=11 // pred_region
          _
        $region24: #{pnet_forward.3} parent=11 // pred_fallthru
          _
      $region12: #{pnet_forward.3} parent=5 // pred_fallthru
        _
      %p185 = scmp.lt.s32.totalorder %s12, 2
      // Predicated region
      $region25: #{pnet_forward.3} parent=5 // pred_check
        %p186 = pneg %p185
      $region26: #{pnet_forward.3} parent=5 // pred_check_branch
        %188 = sbr.rel (%p186) target = $region28
      $region27: #{pnet_forward.3} parent=5 // pred_region
        // Predicated region
        $region29: #{pnet_forward.3} parent=27 // pred_check
          %p189 = pneg %p32
        $region30: #{pnet_forward.3} parent=27 // pred_check_branch
          %191 = sbr.rel (%p189) target = $region32
        $region31: #{pnet_forward.3} parent=27 // pred_region
          %s192 = smul.u32 2, %s12
          %p193 = scmp.lt.s32.totalorder %s192, 3
          %s194 = scalar_select %p193, %s192, 3
          %s195 = smul.addr %s194, 2
          %s196 = scalar_lea.vmem %s0, %s195
          %s197 = smul.u32 2, %s12
        $region32: #{pnet_forward.3} parent=27 // pred_fallthru
          _
        // Predicated region
        $region33: #{pnet_forward.3} parent=27 // pred_check
          %p198 = pneg %p66
        $region34: #{pnet_forward.3} parent=27 // pred_check_branch
          %200 = sbr.rel (%p198) target = $region36
        $region35: #{pnet_forward.3} parent=27 // pred_region
          %s201 = sadd.s32 %s12, 1
          %s202 = smul.u32 %s201, 2
          %p203 = scmp.lt.s32.totalorder %s202, 3
          %s204 = scalar_select %p203, %s202, 3
          %p205 = scmp.lt.s32.totalorder %s204, 3
          %s206 = scalar_select %p205, %s204, 3
          %s207 = smul.addr %s206, 2
          %s208 = scalar_lea.vmem %s1, %s207
          %s209 = sadd.s32 %s12, 1
          %s210 = smul.u32 %s209, 2
          %p211 = scmp.lt.s32.totalorder %s210, 3
          %s212 = scalar_select %p211, %s210, 3
        $region36: #{pnet_forward.3} parent=27 // pred_fallthru
          _
      $region28: #{pnet_forward.3} parent=5 // pred_fallthru
        _
      %p213 = scmp.le.s32.totalorder 1, %s12
      %p214 = scmp.lt.s32.totalorder %s12, 3
      %p215 = pnand %p213, %p214
      %p216 = pneg %p215
      // Predicated region
      $region37: #{pnet_forward.3} parent=5 // pred_check
        _
      $region38: #{pnet_forward.3} parent=5 // pred_check_branch
        %218 = sbr.rel (%p215) target = $region40
      $region39: #{pnet_forward.3} parent=5 // pred_region
        %s219 = ssub.s32 %s12, 1
        %s220 = smul.u32 2, %s17
        %p221 = scmp.lt.s32.totalorder %s220, 3
        %s222 = scalar_select %p221, %s220, 3
        %s223 = smul.addr %s222, 2
        %s224 = scalar_lea.vmem %s0, %s223
        %p225 = pneg %p38
        %p226 = pneg %p35
        %s227 = sadd.s32 %s17, 1
        %s228 = smul.u32 %s227, 2
        %p229 = scmp.lt.s32.totalorder %s228, 3
        %s230 = scalar_select %p229, %s228, 3
        %p231 = scmp.lt.s32.totalorder %s230, 3
        %s232 = scalar_select %p231, %s230, 3
        %s233 = smul.addr %s232, 2
        %s234 = scalar_lea.vmem %s1, %s233
        %p235 = pneg %p72
        %p236 = pneg %p69
        %p237 = pneg %p93
        %p238 = pneg %p90
        %p239 = pneg %p114
        %p240 = pneg %p111
        %p241 = pneg %p135
        %p242 = pneg %p132
        %p243 = pneg %p161
        %p244 = pneg %p158
        %s245 = sand.u32 %s148, 1
        %s246 = sand.u32 %s148, 1
        %s247 = smul.addr %s246, 16
        %s248 = scalar_lea.vmem [#allocation4], %s247
        %s249 = smul.u32 2, %s17
        %p250 = scmp.lt.s32.totalorder %s249, 3
        %s251 = scalar_select %p250, %s249, 3
        %s252 = smul.addr %s251, 2
        %s253 = scalar_lea.vmem %s0, %s252
        %s254 = smul.u32 2, %s17
        %s255 = sadd.s32 %s17, 1
        %s256 = smul.u32 %s255, 2
        %p257 = scmp.lt.s32.totalorder %s256, 3
        %s258 = scalar_select %p257, %s256, 3
        %p259 = scmp.lt.s32.totalorder %s258, 3
        %s260 = scalar_select %p259, %s258, 3
        %s261 = smul.addr %s260, 2
        %s262 = scalar_lea.vmem %s1, %s261
        %s263 = sadd.s32 %s17, 1
        %s264 = smul.u32 %s263, 2
        %p265 = scmp.lt.s32.totalorder %s264, 3
        %s266 = scalar_select %p265, %s264, 3
        %s267 = smul.u32 2, %s17
        %v269 = vld [vmem:[%s253] sm:$0xf]
        %v272 = vunpack.c.l.s4 1983009808
        %v273 = vunpack.c.0.s8 %v272
        %v274 = vlaneseq
        %v275 = vshrl.u32 %v274, 7
        %v276 = vsub.s32 %v273, %v275
        %v277 = vrot.slane %v269, %v276
        %vm279 = vcmask 1041408
        %vm280 = vsmask.f32 1280
        %vm281 = vmand %vm279, %vm280
        %vm282 = vcmask 1045508
        %vm283 = vsmask.f32 5376
        %vm284 = vmand %vm282, %vm283
        %vm285 = vmor %vm284, %vm281
        %v286 = vld [vmem:[#allocation2] sm:$0x33]
        %v287 = vsel %vm285, %v277, %v286
        %288 = vst [vmem:[#allocation2] sm:$0x33] %v287
        %v289 = vld [vmem:[%s253] sm:$0xf]
        %v292 = vunpack.c.l.s4 1983009808
        %v293 = vunpack.c.0.s8 %v292
        %v294 = vlaneseq
        %v295 = vshrl.u32 %v294, 7
        %v296 = vsub.s32 %v293, %v295
        %v297 = vrot.slane %v289, %v296
        %v299 = vshrl.u32 %v297, 16
        %v301 = vrot.slane %v299, 6
        %v302 = vshll.u32 %v297, 16
        %v304 = vrot.slane %v302, 7
        %v305 = vor.u32 %v301, %v304
        %306 = vrot.lane.b32.xlu0 %v305, 127
        %v307 = vpop.permute.xlu0 %306
        %v308 = vrot.slane %v307, 4
        %vm309 = vcmask 1039360
        %v310 = vsel %vm309, %v307, %v308
        %vm312 = vcmask 1042433
        %vm313 = vsmask.f32 7942
        %vm314 = vmand %vm312, %vm313
        %vm315 = vcmask 1038341
        %vm316 = vsmask.f32 7958
        %vm317 = vmand %vm315, %vm316
        %vm318 = vmor %vm317, %vm314
        %v319 = vld [vmem:[#allocation2] sm:$0x66]
        %v320 = vsel %vm318, %v310, %v319
        %321 = vst [vmem:[#allocation2] sm:$0x66] %v320
        %v322 = vld [vmem:[%s262] sm:$0x3]
        %v325 = vunpack.c.l.s4 1983009808
        %v326 = vunpack.c.0.s8 %v325
        %v327 = vlaneseq
        %v328 = vshrl.u32 %v327, 7
        %v329 = vsub.s32 %v326, %v328
        %v330 = vrot.slane %v322, %v329
        %v332 = vshrl.u32 %v330, 16
        %v334 = vrot.slane %v332, 6
        %v335 = vshll.u32 %v330, 16
        %v337 = vrot.slane %v335, 7
        %v338 = vor.u32 %v334, %v337
        %339 = vrot.lane.b32.xlu0 %v338, 127
        %v340 = vpop.permute.xlu0 %339
        %vm342 = vcmask 1043449
        %vm343 = vmand %vm342, %vm313
        %v344 = vld [vmem:[#allocation2 + $0x4] sm:$0x6]
        %v345 = vsel %vm343, %v340, %v344
        %346 = vst [vmem:[#allocation2 + $0x4] sm:$0x6] %v345
        %v347 = vld [vmem:[%s253] sm:$0xf]
        %v350 = vunpack.c.l.s4 1983009808
        %v351 = vunpack.c.0.s8 %v350
        %v352 = vlaneseq
        %v353 = vshrl.u32 %v352, 7
        %v354 = vsub.s32 %v351, %v353
        %v355 = vrot.slane %v347, %v354
        %v356 = vrot.slane %v355, 5
        %v357 = vrot.slane %v356, 4
        %358 = vrot.lane.b32.xlu0 %v356, 126
        %v359 = vpop.permute.xlu0 %358
        %360 = vrot.lane.b32.xlu0 %v357, 126
        %v361 = vpop.permute.xlu0 %360
        %v362 = vrot.slane %v359, 4
        %v363 = vrot.slane %v361, 4
        %vm364 = vcmask 1031168
        %v365 = vsel %vm364, %v359, %v362
        %v366 = vsel %vm364, %v361, %v363
        %vm369 = vcmask 1043459
        %vm370 = vcmask 1031175
        %vm371 = vmor %vm370, %vm369
        %372 = vst.msk [vmem:[#allocation2] sm:$0x88] %vm371, %v365
        %vm373 = vcmask 1040384
        %vm374 = vsmask.f32 256
        %vm375 = vmand %vm373, %vm374
        %vm376 = vcmask 1028100
        %vm377 = vsmask.f32 4352
        %vm378 = vmand %vm376, %vm377
        %vm379 = vmor %vm378, %vm375
        %v380 = vld [vmem:[#allocation2 + $0x8] sm:$0x11]
        %v381 = vsel %vm379, %v366, %v380
        %382 = vst [vmem:[#allocation2 + $0x8] sm:$0x11] %v381
        %v383 = vld [vmem:[%s262] sm:$0x3]
        %v386 = vunpack.c.l.s4 1983009808
        %v387 = vunpack.c.0.s8 %v386
        %v388 = vlaneseq
        %v389 = vshrl.u32 %v388, 7
        %v390 = vsub.s32 %v387, %v389
        %v391 = vrot.slane %v383, %v390
        %v392 = vrot.slane %v391, 5
        %v393 = vrot.slane %v392, 4
        %394 = vrot.lane.b32.xlu0 %v392, 126
        %v395 = vpop.permute.xlu0 %394
        %396 = vrot.lane.b32.xlu0 %v393, 126
        %v397 = vpop.permute.xlu0 %396
        %vm400 = vcmask 1044467
        %401 = vst.msk [vmem:[#allocation2 + $0x4] sm:$0x8] %vm400, %v395
        %vm402 = vcmask 1041392
        %vm403 = vmand %vm402, %vm374
        %v404 = vld [vmem:[#allocation2 + $0xc] sm:$0x1]
        %v405 = vsel %vm403, %v397, %v404
        %406 = vst [vmem:[#allocation2 + $0xc] sm:$0x1] %v405
        %v407 = vld [vmem:[%s253] sm:$0xf]
        %v410 = vunpack.c.l.s4 1983009808
        %v411 = vunpack.c.0.s8 %v410
        %v412 = vlaneseq
        %v413 = vshrl.u32 %v412, 7
        %v414 = vsub.s32 %v411, %v413
        %v415 = vrot.slane %v407, %v414
        %v417 = vshrl.u32 %v415, 16
        %v419 = vrot.slane %v417, 7
        %v420 = vshll.u32 %v415, 16
        %v422 = vor.u32 %v419, %v420
        %423 = vrot.lane.b32.xlu0 %v422, 112
        %v424 = vpop.permute.xlu0 %423
        %v425 = vrot.slane %v424, 4
        %vm426 = vcmask 916480
        %v427 = vsel %vm426, %v424, %v425
        %vm429 = vsmask.f32 7938
        %vm430 = vmand %vm279, %vm429
        %vm431 = vcmask 914436
        %vm432 = vsmask.f32 7954
        %vm433 = vmand %vm431, %vm432
        %vm434 = vmor %vm433, %vm430
        %v435 = vld [vmem:[#allocation2 + $0x8] sm:$0x33]
        %v436 = vsel %vm434, %v427, %v435
        %437 = vst [vmem:[#allocation2 + $0x8] sm:$0x33] %v436
        %v438 = vld [vmem:[%s262] sm:$0x3]
        %v441 = vunpack.c.l.s4 1983009808
        %v442 = vunpack.c.0.s8 %v441
        %v443 = vlaneseq
        %v444 = vshrl.u32 %v443, 7
        %v445 = vsub.s32 %v442, %v444
        %v446 = vrot.slane %v438, %v445
        %v448 = vshrl.u32 %v446, 16
        %v450 = vrot.slane %v448, 7
        %v451 = vshll.u32 %v446, 16
        %v453 = vor.u32 %v450, %v451
        %454 = vrot.lane.b32.xlu0 %v453, 112
        %v455 = vpop.permute.xlu0 %454
        %vm457 = vcmask 1042304
        %vm458 = vmand %vm457, %vm429
        %v459 = vld [vmem:[#allocation2 + $0xc] sm:$0x3]
        %v460 = vsel %vm458, %v455, %v459
        %461 = vst [vmem:[#allocation2 + $0xc] sm:$0x3] %v460
        %v462 = vld [vmem:[%s253] sm:$0xf]
        %v464 = vcombine.low %v462, %v462
        %v466 = vunpack.c.l.s4 1983009808
        %v467 = vunpack.c.0.s8 %v466
        %v468 = vlaneseq
        %v469 = vshrl.u32 %v468, 7
        %v470 = vsub.s32 %v467, %v469
        %v471 = vrot.slane %v464, %v470
        %472 = vrot.lane.b32.xlu0 %v471, 111
        %v473 = vpop.permute.xlu0 %472
        %v474 = vrot.slane %v473, 4
        %vm475 = vcmask 908288
        %v476 = vsel %vm475, %v473, %v474
        %vm478 = vcmask 1043458
        %vm479 = vsmask.f32 3328
        %vm480 = vmand %vm478, %vm479
        %vm481 = vcmask 908294
        %vm482 = vsmask.f32 7424
        %vm483 = vmand %vm481, %vm482
        %vm484 = vmor %vm483, %vm480
        %v485 = vld [vmem:[#allocation2 + $0x8] sm:$0xcc]
        %v486 = vsel %vm484, %v476, %v485
        %487 = vst [vmem:[#allocation2 + $0x8] sm:$0xcc] %v486
        %v488 = vld [vmem:[%s262] sm:$0x3]
        %v490 = vcombine.low %v488, %v488
        %v492 = vunpack.c.l.s4 1983009808
        %v493 = vunpack.c.0.s8 %v492
        %v494 = vlaneseq
        %v495 = vshrl.u32 %v494, 7
        %v496 = vsub.s32 %v493, %v495
        %v497 = vrot.slane %v490, %v496
        %498 = vrot.lane.b32.xlu0 %v497, 111
        %v499 = vpop.permute.xlu0 %498
        %vm501 = vcmask 1044346
        %vm502 = vmand %vm501, %vm479
        %v503 = vld [vmem:[#allocation2 + $0xc] sm:$0xc]
        %v504 = vsel %vm502, %v499, %v503
        %505 = vst [vmem:[#allocation2 + $0xc] sm:$0xc] %v504
        %v506 = vld [vmem:[%s253] sm:$0xf]
        %v509 = vunpack.c.l.s4 1983009808
        %v510 = vunpack.c.0.s8 %v509
        %v511 = vlaneseq
        %v512 = vshrl.u32 %v511, 7
        %v513 = vsub.s32 %v510, %v512
        %v514 = vrot.slane %v506, %v513
        %v516 = vshll.u32 %v514, 16
        %v518 = vrot.slane %v516, 5
        %v519 = vshrl.u32 %v514, 16
        %v521 = vrot.slane %v519, 4
        %v522 = vor.u32 %v521, %v518
        %v523 = vrot.slane %v522, 4
        %524 = vrot.lane.b32.xlu0 %v518, 110
        %v525 = vpop.permute.xlu0 %524
        %526 = vrot.lane.b32.xlu0 %v523, 110
        %v527 = vpop.permute.xlu0 %526
        %v528 = vrot.slane %v525, 4
        %v529 = vrot.slane %v527, 4
        %vm530 = vcmask 900096
        %v531 = vsel %vm530, %v525, %v528
        %v532 = vsel %vm530, %v527, %v529
        %vm535 = vcmask 1043459
        %vm536 = vsmask.f32 7950
        %vm537 = vmand %vm535, %vm536
        %vm538 = vcmask 900103
        %vm539 = vsmask.f32 7966
        %vm540 = vmand %vm538, %vm539
        %vm541 = vmor %vm540, %vm537
        %v542 = vld [vmem:[#allocation2 + $0x8] sm:$0x88]
        %v543 = vsel %vm541, %v531, %v542
        %544 = vst [vmem:[#allocation2 + $0x8] sm:$0x88] %v543
        %vm545 = vcmask 1040384
        %vm546 = vcmask 897028
        %vm547 = vmor %vm546, %vm545
        %548 = vst.msk [vmem:[#allocation2 + $0x10] sm:$0x11] %vm547, %v532
        %v549 = vld [vmem:[%s262] sm:$0x3]
        %v552 = vunpack.c.l.s4 1983009808
        %v553 = vunpack.c.0.s8 %v552
        %v554 = vlaneseq
        %v555 = vshrl.u32 %v554, 7
        %v556 = vsub.s32 %v553, %v555
        %v557 = vrot.slane %v549, %v556
        %v559 = vshll.u32 %v557, 16
        %v561 = vrot.slane %v559, 5
        %v562 = vshrl.u32 %v557, 16
        %v564 = vrot.slane %v562, 4
        %v565 = vor.u32 %v564, %v561
        %v566 = vrot.slane %v565, 4
        %567 = vrot.lane.b32.xlu0 %v561, 110
        %v568 = vpop.permute.xlu0 %567
        %569 = vrot.lane.b32.xlu0 %v566, 110
        %v570 = vpop.permute.xlu0 %569
        %vm573 = vcmask 1044339
        %vm574 = vmand %vm573, %vm536
        %v575 = vld [vmem:[#allocation2 + $0xc] sm:$0x8]
        %v576 = vsel %vm574, %v568, %v575
        %577 = vst [vmem:[#allocation2 + $0xc] sm:$0x8] %v576
        %vm578 = vcmask 1041264
        %579 = vst.msk [vmem:[#allocation2 + $0x14] sm:$0x1] %vm578, %v570
        %v580 = vld [vmem:[%s253] sm:$0xf]
        %v583 = vunpack.c.l.s4 1983009808
        %v584 = vunpack.c.0.s8 %v583
        %v585 = vlaneseq
        %v586 = vshrl.u32 %v585, 7
        %v587 = vsub.s32 %v584, %v586
        %v588 = vrot.slane %v580, %v587
        %v589 = vrot.slane %v588, 7
        %590 = vrot.lane.b32.xlu0 %v589, 96
        %v591 = vpop.permute.xlu0 %590
        %v592 = vrot.slane %v591, 4
        %vm593 = vcmask 785408
        %v594 = vsel %vm593, %v591, %v592
        %vm596 = vsmask.f32 2304
        %vm597 = vmand %vm312, %vm596
        %vm598 = vcmask 784389
        %vm599 = vsmask.f32 6400
        %vm600 = vmand %vm598, %vm599
        %vm601 = vmor %vm600, %vm597
        %v602 = vld [vmem:[#allocation2 + $0x10] sm:$0x66]
        %v603 = vsel %vm601, %v594, %v602
        %604 = vst [vmem:[#allocation2 + $0x10] sm:$0x66] %v603
        %v605 = vld [vmem:[%s262] sm:$0x3]
        %v608 = vunpack.c.l.s4 1983009808
        %v609 = vunpack.c.0.s8 %v608
        %v610 = vlaneseq
        %v611 = vshrl.u32 %v610, 7
        %v612 = vsub.s32 %v609, %v611
        %v613 = vrot.slane %v605, %v612
        %v614 = vrot.slane %v613, 7
        %615 = vrot.lane.b32.xlu0 %v614, 96
        %v616 = vpop.permute.xlu0 %615
        %vm618 = vcmask 1043201
        %vm619 = vmand %vm618, %vm596
        %v620 = vld [vmem:[#allocation2 + $0x14] sm:$0x6]
        %v621 = vsel %vm619, %v616, %v620
        %622 = vst [vmem:[#allocation2 + $0x14] sm:$0x6] %v621
        %v623 = vld [vmem:[%s253] sm:$0xf]
        %v626 = vunpack.c.l.s4 1983009808
        %v627 = vunpack.c.0.s8 %v626
        %v628 = vlaneseq
        %v629 = vshrl.u32 %v628, 7
        %v630 = vsub.s32 %v627, %v629
        %v631 = vrot.slane %v623, %v630
        %v633 = vshrl.u32 %v631, 16
        %v635 = vrot.slane %v633, 5
        %v636 = vshll.u32 %v631, 16
        %v638 = vrot.slane %v636, 6
        %v639 = vor.u32 %v635, %v638
        %640 = vrot.lane.b32.xlu0 %v639, 95
        %v641 = vpop.permute.xlu0 %640
        %v642 = vrot.slane %v641, 4
        %vm643 = vcmask 777216
        %v644 = vsel %vm643, %v641, %v642
        %vm646 = vsmask.f32 7946
        %vm647 = vmand %vm478, %vm646
        %vm648 = vcmask 777222
        %vm649 = vsmask.f32 7962
        %vm650 = vmand %vm648, %vm649
        %vm651 = vmor %vm650, %vm647
        %v652 = vld [vmem:[#allocation2 + $0x10] sm:$0xcc]
        %v653 = vsel %vm651, %v644, %v652
        %654 = vst [vmem:[#allocation2 + $0x10] sm:$0xcc] %v653
        %v655 = vld [vmem:[%s262] sm:$0x3]
        %v658 = vunpack.c.l.s4 1983009808
        %v659 = vunpack.c.0.s8 %v658
        %v660 = vlaneseq
        %v661 = vshrl.u32 %v660, 7
        %v662 = vsub.s32 %v659, %v661
        %v663 = vrot.slane %v655, %v662
        %v665 = vshrl.u32 %v663, 16
        %v667 = vrot.slane %v665, 5
        %v668 = vshll.u32 %v663, 16
        %v670 = vrot.slane %v668, 6
        %v671 = vor.u32 %v667, %v670
        %672 = vrot.lane.b32.xlu0 %v671, 95
        %v673 = vpop.permute.xlu0 %672
        %vm675 = vcmask 1044218
        %vm676 = vmand %vm675, %vm646
        %v677 = vld [vmem:[#allocation2 + $0x14] sm:$0xc]
        %v678 = vsel %vm676, %v673, %v677
        %679 = vst [vmem:[#allocation2 + $0x14] sm:$0xc] %v678
        %v680 = vld [vmem:[%s253] sm:$0xf]
        %v683 = vunpack.c.l.s4 1983009808
        %v684 = vunpack.c.0.s8 %v683
        %v685 = vlaneseq
        %v686 = vshrl.u32 %v685, 7
        %v687 = vsub.s32 %v684, %v686
        %v688 = vrot.slane %v680, %v687
        %689 = vrot.lane.b32.xlu0 %v688, 94
        %v690 = vpop.permute.xlu0 %689
        %v691 = vrot.slane %v690, 4
        %vm692 = vcmask 769024
        %v693 = vsel %vm692, %v690, %v691
        %vm695 = vcmask 766980
        %vm696 = vmand %vm695, %vm283
        %vm697 = vmor %vm696, %vm281
        %v698 = vld [vmem:[#allocation2 + $0x18] sm:$0x33]
        %v699 = vsel %vm697, %v693, %v698
        %700 = vst [vmem:[#allocation2 + $0x18] sm:$0x33] %v699
        %v701 = vld [vmem:[%s262] sm:$0x3]
        %v704 = vunpack.c.l.s4 1983009808
        %v705 = vunpack.c.0.s8 %v704
        %v706 = vlaneseq
        %v707 = vshrl.u32 %v706, 7
        %v708 = vsub.s32 %v705, %v707
        %v709 = vrot.slane %v701, %v708
        %710 = vrot.lane.b32.xlu0 %v709, 94
        %v711 = vpop.permute.xlu0 %710
        %vm713 = vcmask 1042160
        %vm714 = vmand %vm713, %vm280
        %v715 = vld [vmem:[#allocation2 + $0x1c] sm:$0x3]
        %v716 = vsel %vm714, %v711, %v715
        %717 = vst [vmem:[#allocation2 + $0x1c] sm:$0x3] %v716
        %v718 = vld [vmem:[%s2] sm:$0xf]
        %v719 = vld [vmem:[%s2 + $0x4] sm:$0x1]
        %v720 = vld [vmem:[#allocation2] sm:$0xff]
        %v721 = vld [vmem:[#allocation2 + $0x8] sm:$0xff]
        %v722 = vld [vmem:[#allocation2 + $0x10] sm:$0xff]
        %v723 = vld [vmem:[#allocation2 + $0x18] sm:$0x33]
        %v724 = vld [vmem:[%s3] sm:$0xff]
        %v725 = vld [vmem:[%s3 + $0x8] sm:$0x3]
        %727 = vset.pattern.permute.xlu0 0
        %728 = vperm.xlu0 %727, %v724
        %v729 = vpop.permute.xlu0 %728
        %732 = vset.pattern.permute.xlu0 0
        %733 = vperm.xlu0 %732, %v725
        %v734 = vpop.permute.xlu0 %733
        %v738 = vunpack.c.l.b16 %v718
        %v739 = vunpack.c.l.b16 %v719
        %v740 = vpack.c.b16 %v739, %v738
        %v745 = vunpack.c.l.b16 %v720
        %v746 = vunpack.c.h.b16 %v720
        %v747 = vunpack.c.l.b16 %v721
        %v748 = vunpack.c.h.b16 %v721
        %v749 = vunpack.c.l.b16 %v722
        %v750 = vunpack.c.h.b16 %v722
        %v751 = vunpack.c.l.b16 %v723
        %v752 = vunpack.c.h.b16 %v723
        %v753 = vpack.c.b16 %v747, %v745
        %v754 = vpack.c.b16 %v748, %v746
        %v755 = vpack.c.b16 %v751, %v749
        %v756 = vpack.c.b16 %v752, %v750
        %vm759 = vcmask 220160
        %v761 = vsel %vm759, %v740, 0
        %vm763 = vcmask 1044480
        %vm764 = vcmask 1045504
        %v765 = vsel %vm763, 4294967295, 65535
        %v766 = vsel %vm764, %v765, 0
        %v768 = vand.u32 %v755, %v766
        %v771 = vand.u32 %v756, %v766
        %773 = vmatprep.subr.bf16.mxu0 0
        %774 = vmatpush1.bf16.msra.mxu0 0
        %775 = vmatprep.subr.bf16.mxu0 0
        %776 = vmatpush1.bf16.msra.mxu0 0
        %777 = vmatprep.subr.bf16.mxu0 0
        %778 = vmatpush1.bf16.msra.mxu0 0
        %779 = vmatprep.subr.bf16.mxu0 0
        %780 = vmatpush1.bf16.msra.mxu0 0
        %781 = vmatprep.subr.bf16.mxu0 0
        %782 = vmatpush1.bf16.msra.mxu0 0
        %783 = vmatprep.subr.bf16.mxu0 0
        %784 = vmatpush1.bf16.msra.mxu0 0
        %785 = vmatprep.subr.bf16.mxu0 %v771
        %786 = vmatpush1.bf16.msra.mxu0 %v768
        %787 = vmatprep.subr.bf16.mxu0 %v754
        %788 = vmatpush1.bf16.msra.mxu0 %v753
        %789 = vmatprep.subr.bf16.mxu0 0
        %790 = vmatpush2.bf16.msra.mxu0 0
        %791 = vmatprep.subr.bf16.mxu0 0
        %792 = vmatpush2.bf16.msra.mxu0 0
        %793 = vmatprep.subr.bf16.mxu0 0
        %794 = vmatpush2.bf16.msra.mxu0 0
        %795 = vmatprep.subr.bf16.mxu0 0
        %796 = vmatpush2.bf16.msra.mxu0 0
        %797 = vmatprep.subr.bf16.mxu0 0
        %798 = vmatpush2.bf16.msra.mxu0 0
        %799 = vmatprep.subr.bf16.mxu0 0
        %800 = vmatpush2.bf16.msra.mxu0 0
        %801 = vmatprep.subr.bf16.mxu0 0
        %802 = vmatpush2.bf16.msra.mxu0 0
        %803 = vmatprep.subr.bf16.mxu0 0
        %804 = vmatpush2.bf16.msra.mxu0 0
        %805 = vmatprep.mubr.bf16.mxu0 0
        %806 = vmatmul.mubr.bf16.gmra.mxu0 %v761
        %v807 = vpop.f32.mrf.mxu0
        %v808 = vadd.f32 %v729, %v807
        %v809 = vpop.f32.mrf.mxu0
        %v810 = vadd.f32 %v729, %v809
        %v811 = vpop.f32.mrf.mxu0
        %v812 = vadd.f32 %v734, %v811
        %v813 = vpop.f32.mrf.mxu0
        %v814 = vadd.f32 %v734, %v813
        %815 = vdwg.mxu0
        %s816 = sld [smem:[#allocation3]]
        %vm817 = vcmp.gt.f32.partialorder %v808, 0.0
        %vm818 = vcmp.gt.f32.partialorder %v810, 0.0
        %vm819 = vcmp.gt.f32.partialorder %v812, 0.0
        %vm820 = vcmp.gt.f32.partialorder %v814, 0.0
        %v821 = vstv %s816
        %v822 = vmul.f32 %v821, %v808
        %v823 = vmul.f32 %v821, %v810
        %v824 = vmul.f32 %v821, %v812
        %v825 = vmul.f32 %v821, %v814
        %v826 = vsel %vm817, %v808, %v822
        %v827 = vsel %vm818, %v810, %v823
        %v828 = vsel %vm819, %v812, %v824
        %v829 = vsel %vm820, %v814, %v825
        %v830 = vpack.c.bf16 %v828, %v826
        %v831 = vpack.c.bf16 %v829, %v827
        %v834 = vunpack.c.l.b16 %v830
        %v835 = vunpack.c.l.b16 %v831
        %v836 = vunpack.c.h.b16 %v830
        %v837 = vunpack.c.h.b16 %v831
        %v838 = vpack.c.b16 %v835, %v834
        %v839 = vpack.c.b16 %v837, %v836
        %842 = vst [vmem:[%s248] sm:$0xff] %v838
        %843 = vst [vmem:[%s248 + $0x8] sm:$0x11] %v839
        %s844 = sand.u32 %s148, 1
        %s845 = sand.u32 %s148, 1
        %s846 = smul.addr %s845, 16
        %s847 = scalar_lea.vmem [#allocation4], %s846
        // Predicated region
        $region41: #{pnet_forward.3} parent=39 // pred_check
          %p848 = pneg %p158
        $region42: #{pnet_forward.3} parent=39 // pred_check_branch
          %850 = sbr.rel (%p848) target = $region44
        $region43: #{pnet_forward.3} parent=39 // pred_region
          %s851 = smul.u32 2, %s17
          %s852 = smul.addr %s851, 4
          %s853 = scalar_lea.vmem %s5, %s852
          // Predicated region
          $region45: #{pnet_forward.3} parent=43 // pred_check
            _
          $region46: #{pnet_forward.3} parent=43 // pred_check_branch
            %855 = sbr.rel (0) target = $region48
          $region47: #{pnet_forward.3} parent=43 // pred_region
            // Predicated region
            $region49: #{pnet_forward.3} parent=47 // pred_check
              _
            $region50: #{pnet_forward.3} parent=47 // pred_check_branch
              %857 = sbr.rel (0) target = $region52
            $region51: #{pnet_forward.3} parent=47 // pred_region
              // Predicated region
              $region64: #{pnet_forward.3} parent=51 // pred_check
                _
              $region65: #{pnet_forward.3} parent=51 // pred_check_branch
                %875 = sbr.rel (0) target = $region67
              $region66: #{pnet_forward.3} parent=51 // pred_region
                loop: start=0, step=1, limit=1
                $region68: #{pnet_forward.3} parent=66 // loop_pre_header
                  _
                $region69: #{pnet_forward.3} parent=66 // loop_header
                  %s877 = sphi 0, %s881
                  %p878 = scmp.ge.s32.totalorder %s877, 1
                  %s882 = sphi %s847, %s847
                  %s883 = sphi %s853, %s853
                $region70: #{pnet_forward.3} parent=66 // loop_header_branch
                  %880 = sbr.rel (%p878) target = $region74
                $region71: #{pnet_forward.3} parent=66 // loop_body
                  %v884 = vld [vmem:[%s882] sm:$0xff]
                  %885 = vst [vmem:[%s883] sm:$0xff] %v884
                  %v886 = vld [vmem:[%s882 + $0x8] sm:$0xff]
                  %887 = vst [vmem:[%s883 + $0x10] sm:$0xff] %v886
                $region72: #{pnet_forward.3} parent=66 // loop_footer
                  %s881 = sadd.s32 1, %s877
                $region73: #{pnet_forward.3} parent=66 // loop_footer_branch
                  %876 = sbr.rel target = $region69
                $region74: #{pnet_forward.3} parent=66 // loop_exit
                  _
              $region67: #{pnet_forward.3} parent=51 // pred_fallthru
                _
              // Predicated region
              $region75: #{pnet_forward.3} parent=51 // pred_check
                _
              $region76: #{pnet_forward.3} parent=51 // pred_check_branch
                %889 = sbr.rel target = $region78
              $region77: #{pnet_forward.3} parent=51 // pred_region
                _
              $region78: #{pnet_forward.3} parent=51 // pred_fallthru
                _
            $region52: #{pnet_forward.3} parent=47 // pred_fallthru
              _
            // Predicated region
            $region53: #{pnet_forward.3} parent=47 // pred_check
              _
            $region54: #{pnet_forward.3} parent=47 // pred_check_branch
              %859 = sbr.rel target = $region56
            $region55: #{pnet_forward.3} parent=47 // pred_region
              %s861 = ssub.s32 256, 1
              loop: start=0, step=1, limit=1
              $region57: #{pnet_forward.3} parent=55 // loop_pre_header
                _
              $region58: #{pnet_forward.3} parent=55 // loop_header
                %s863 = sphi 0, %s867
                %p864 = scmp.ge.s32.totalorder %s863, 1
                %s868 = sphi %s847, %s847
                %s869 = sphi %s853, %s853
              $region59: #{pnet_forward.3} parent=55 // loop_header_branch
                %866 = sbr.rel (%p864) target = $region63
              $region60: #{pnet_forward.3} parent=55 // loop_body
                %v870 = vld [vmem:[%s868] sm:%s861]
                %871 = vst [vmem:[%s869] sm:%s861] %v870
                %v872 = vld [vmem:[%s868 + $0x8] sm:%s861]
                %873 = vst [vmem:[%s869 + $0x10] sm:%s861] %v872
              $region61: #{pnet_forward.3} parent=55 // loop_footer
                %s867 = sadd.s32 1, %s863
              $region62: #{pnet_forward.3} parent=55 // loop_footer_branch
                %862 = sbr.rel target = $region58
              $region63: #{pnet_forward.3} parent=55 // loop_exit
                _
            $region56: #{pnet_forward.3} parent=47 // pred_fallthru
              _
          $region48: #{pnet_forward.3} parent=43 // pred_fallthru
            _
          %890 = vnop
        $region44: #{pnet_forward.3} parent=39 // pred_fallthru
          _
      $region40: #{pnet_forward.3} parent=5 // pred_fallthru
        _
      %p891 = scmp.le.s32.totalorder 2, %s12
      // Predicated region
      $region79: #{pnet_forward.3} parent=5 // pred_check
        %p892 = pneg %p891
      $region80: #{pnet_forward.3} parent=5 // pred_check_branch
        %894 = sbr.rel (%p892) target = $region82
      $region81: #{pnet_forward.3} parent=5 // pred_region
        %s895 = ssub.s32 %s12, 2
        // Predicated region
        $region83: #{pnet_forward.3} parent=81 // pred_check
          %p896 = pneg %p164
        $region84: #{pnet_forward.3} parent=81 // pred_check_branch
          %898 = sbr.rel (%p896) target = $region86
        $region85: #{pnet_forward.3} parent=81 // pred_region
          %s899 = sand.u32 %s149, 1
          %s900 = sand.u32 %s149, 1
          %s901 = smul.addr %s900, 16
          %s902 = scalar_lea.vmem [#allocation4], %s901
        $region86: #{pnet_forward.3} parent=81 // pred_fallthru
          _
      $region82: #{pnet_forward.3} parent=5 // pred_fallthru
        _
    $region6: #{pnet_forward.3} parent=1 // loop_footer
      %s16 = sadd.s32 1, %s12
    $region7: #{pnet_forward.3} parent=1 // loop_footer_branch
      %11 = sbr.rel target = $region3
    $region8: #{pnet_forward.3} parent=1 // loop_exit
      _

// kernel: pnet_forward.5
$region0: #{pnet_forward.5}
  #allocation0 [shape = 'u32[]', space=smem, size = 0x4, offset = 0x4, fixed_abs, tag = 'smem constant byte address 0x4 - core index']
  #allocation1 [shape = 'u32[144,128]{1,0:T(1,128)}', space=vmem, size = 0x12000, scoped, tag = 'internal scratch']
  #allocation2 [shape = 'bf16[144,128]{1,0:T(8,128)(2,1)}', space=vmem, size = 0x9000, scoped, tag = 'scratch operand']
  #allocation3 [shape = 'f32[1,1]{1,0:T(1,128)S(6)}', space=smem, size = 0x200, scoped, tag = 'scoped memory for pnet_forward.5']
  %s0 = inlined_call_operand.vmem [shape: bf16[16,98], index: 0, kind: input, shape index: {}, may-alias: {0,1}]
  %s1 = inlined_call_operand.vmem [shape: bf16[16,98], index: 1, kind: input, shape index: {}, may-alias: {0,1}]
  %s2 = inlined_call_operand.vmem [shape: bf16[32,144], index: 2, kind: input, shape index: {}]
  %s3 = inlined_call_operand.vmem [shape: f32[32,1], index: 3, kind: input, shape index: {}]
  %s4 = inlined_call_operand.vmem [shape: bf16[5,32], index: 4, kind: input, shape index: {}]
  %s5 = inlined_call_operand.vmem [shape: f32[5,1], index: 5, kind: input, shape index: {}]
  %s6 = inlined_call_operand.<no memory space> [shape: f32[1,1], index: 6, kind: input, shape index: {}]
  %s7 = inlined_call_operand.vmem [shape: f32[5,98], index: 7, kind: output, shape index: {}]
  %s8 = sld [smem:[#allocation0]]
  $region38: #{pnet_forward.5} parent=0
    _
  %s10 = ssub.s32 1, %s8
  %s11 = scalar_select 0, %s10, %s8
  %12 = sst [smem:[#allocation3]] %s6
  // Predicated region
  $region2: #{pnet_forward.5} parent=0 // pred_check
    _
  $region3: #{pnet_forward.5} parent=0 // pred_check_branch
    %14 = sbr.rel (0) target = $region5
  $region4: #{pnet_forward.5} parent=0 // pred_region
    _
  $region5: #{pnet_forward.5} parent=0 // pred_fallthru
    _
  // Predicated region
  $region6: #{pnet_forward.5} parent=0 // pred_check
    _
  $region7: #{pnet_forward.5} parent=0 // pred_check_branch
    %16 = sbr.rel (0) target = $region9
  $region8: #{pnet_forward.5} parent=0 // pred_region
    %s17 = sadd.s32 0, 1
    %p18 = scmp.lt.s32.totalorder %s17, 0
    %s19 = scalar_select %p18, %s17, 0
    %p20 = scmp.lt.s32.totalorder %s19, 0
    %s21 = scalar_select %p20, %s19, 0
    %s22 = smul.addr %s21, 4
    %s23 = scalar_lea.vmem %s1, %s22
    %s24 = sadd.s32 0, 1
    %p25 = scmp.lt.s32.totalorder %s24, 0
    %s26 = scalar_select %p25, %s24, 0
  $region9: #{pnet_forward.5} parent=0 // pred_fallthru
    _
  // Predicated region
  $region10: #{pnet_forward.5} parent=0 // pred_check
    _
  $region11: #{pnet_forward.5} parent=0 // pred_check_branch
    %28 = sbr.rel (0) target = $region13
  $region12: #{pnet_forward.5} parent=0 // pred_region
    _
  $region13: #{pnet_forward.5} parent=0 // pred_fallthru
    _
  // Predicated region
  $region14: #{pnet_forward.5} parent=0 // pred_check
    _
  $region15: #{pnet_forward.5} parent=0 // pred_check_branch
    %30 = sbr.rel (0) target = $region17
  $region16: #{pnet_forward.5} parent=0 // pred_region
    _
  $region17: #{pnet_forward.5} parent=0 // pred_fallthru
    _
  // Predicated region
  $region18: #{pnet_forward.5} parent=0 // pred_check
    _
  $region19: #{pnet_forward.5} parent=0 // pred_check_branch
    %32 = sbr.rel (0) target = $region21
  $region20: #{pnet_forward.5} parent=0 // pred_region
    _
  $region21: #{pnet_forward.5} parent=0 // pred_fallthru
    _
  // Predicated region
  $region22: #{pnet_forward.5} parent=0 // pred_check
    _
  $region23: #{pnet_forward.5} parent=0 // pred_check_branch
    %34 = sbr.rel (0) target = $region25
  $region24: #{pnet_forward.5} parent=0 // pred_region
    _
  $region25: #{pnet_forward.5} parent=0 // pred_fallthru
    _
  // Predicated region
  $region26: #{pnet_forward.5} parent=0 // pred_check
    _
  $region27: #{pnet_forward.5} parent=0 // pred_check_branch
    %36 = sbr.rel (0) target = $region29
  $region28: #{pnet_forward.5} parent=0 // pred_region
    _
  $region29: #{pnet_forward.5} parent=0 // pred_fallthru
    _
  %s37 = sadd.s32 0, 1
  %p38 = scmp.lt.s32.totalorder %s37, 0
  %s39 = scalar_select %p38, %s37, 0
  %p40 = scmp.lt.s32.totalorder %s39, 0
  %s41 = scalar_select %p40, %s39, 0
  %s42 = smul.addr %s41, 4
  %s43 = scalar_lea.vmem %s1, %s42
  %s44 = sadd.s32 0, 1
  %p45 = scmp.lt.s32.totalorder %s44, 0
  %s46 = scalar_select %p45, %s44, 0
  %p47 = scmp.lt.s32.totalorder %s46, 0
  %s48 = scalar_select %p47, %s46, 0
  %s49 = smul.addr %s48, 4
  %s50 = scalar_lea.vmem %s1, %s49
  %s51 = sadd.s32 0, 1
  %p52 = scmp.lt.s32.totalorder %s51, 0
  %s53 = scalar_select %p52, %s51, 0
  %v55 = vld [vmem:[%s0] sm:$0xf]
  %v56 = vld [vmem:[%s0 + $0x4] sm:$0xf]
  %57 = vst [vmem:[#allocation2] sm:$0xf] %v55
  %58 = vst [vmem:[#allocation2 + $0x4] sm:$0xf] %v56
  %v59 = vld [vmem:[%s0] sm:$0xf]
  %v60 = vld [vmem:[%s0 + $0x4] sm:$0xf]
  %63 = vrot.lane.b32.xlu0 %v59, 127
  %v64 = vpop.permute.xlu0 %63
  %65 = vrot.lane.b32.xlu0 %v60, 127
  %v66 = vpop.permute.xlu0 %65
  %vm69 = vcmask 1035264
  %70 = vst.msk [vmem:[#allocation2 + $0x8] sm:$0xf] %vm69, %v64
  %71 = vst.msk [vmem:[#allocation2 + $0xc] sm:$0xf] %vm69, %v66
  %v72 = vld [vmem:[%s50] sm:$0xf]
  %v73 = vld [vmem:[%s50 + $0x4] sm:$0xf]
  %76 = vrot.lane.b32.xlu0 %v72, 127
  %v77 = vpop.permute.xlu0 %76
  %78 = vrot.lane.b32.xlu0 %v73, 127
  %v79 = vpop.permute.xlu0 %78
  %vm82 = vcmask 1044472
  %83 = vst.msk [vmem:[#allocation2 + $0x8] sm:$0xf] %vm82, %v77
  %84 = vst.msk [vmem:[#allocation2 + $0xc] sm:$0xf] %vm82, %v79
  %v85 = vld [vmem:[%s0] sm:$0xf]
  %v86 = vld [vmem:[%s0 + $0x4] sm:$0xf]
  %89 = vrot.lane.b32.xlu0 %v85, 126
  %v90 = vpop.permute.xlu0 %89
  %91 = vrot.lane.b32.xlu0 %v86, 126
  %v92 = vpop.permute.xlu0 %91
  %vm95 = vcmask 1027072
  %96 = vst.msk [vmem:[#allocation2 + $0x10] sm:$0xf] %vm95, %v90
  %97 = vst.msk [vmem:[#allocation2 + $0x14] sm:$0xf] %vm95, %v92
  %v98 = vld [vmem:[%s50] sm:$0xf]
  %v99 = vld [vmem:[%s50 + $0x4] sm:$0xf]
  %102 = vrot.lane.b32.xlu0 %v98, 126
  %v103 = vpop.permute.xlu0 %102
  %104 = vrot.lane.b32.xlu0 %v99, 126
  %v105 = vpop.permute.xlu0 %104
  %vm108 = vcmask 1044464
  %109 = vst.msk [vmem:[#allocation2 + $0x10] sm:$0xf] %vm108, %v103
  %110 = vst.msk [vmem:[#allocation2 + $0x14] sm:$0xf] %vm108, %v105
  %v111 = vld [vmem:[%s0] sm:$0xf]
  %v112 = vld [vmem:[%s0 + $0x4] sm:$0xf]
  %115 = vrot.lane.b32.xlu0 %v111, 121
  %v116 = vpop.permute.xlu0 %115
  %117 = vrot.lane.b32.xlu0 %v112, 121
  %v118 = vpop.permute.xlu0 %117
  %vm121 = vcmask 986112
  %122 = vst.msk [vmem:[#allocation2 + $0x18] sm:$0xf] %vm121, %v116
  %123 = vst.msk [vmem:[#allocation2 + $0x1c] sm:$0xf] %vm121, %v118
  %v124 = vld [vmem:[%s50] sm:$0xf]
  %v125 = vld [vmem:[%s50 + $0x4] sm:$0xf]
  %128 = vrot.lane.b32.xlu0 %v124, 121
  %v129 = vpop.permute.xlu0 %128
  %130 = vrot.lane.b32.xlu0 %v125, 121
  %v131 = vpop.permute.xlu0 %130
  %vm134 = vcmask 1044424
  %135 = vst.msk [vmem:[#allocation2 + $0x18] sm:$0xf] %vm134, %v129
  %136 = vst.msk [vmem:[#allocation2 + $0x1c] sm:$0xf] %vm134, %v131
  %v137 = vld [vmem:[%s0] sm:$0xf]
  %v138 = vld [vmem:[%s0 + $0x4] sm:$0xf]
  %141 = vrot.lane.b32.xlu0 %v137, 120
  %v142 = vpop.permute.xlu0 %141
  %143 = vrot.lane.b32.xlu0 %v138, 120
  %v144 = vpop.permute.xlu0 %143
  %vm147 = vcmask 977920
  %148 = vst.msk [vmem:[#allocation2 + $0x20] sm:$0xf] %vm147, %v142
  %149 = vst.msk [vmem:[#allocation2 + $0x24] sm:$0xf] %vm147, %v144
  %v150 = vld [vmem:[%s50] sm:$0xf]
  %v151 = vld [vmem:[%s50 + $0x4] sm:$0xf]
  %154 = vrot.lane.b32.xlu0 %v150, 120
  %v155 = vpop.permute.xlu0 %154
  %156 = vrot.lane.b32.xlu0 %v151, 120
  %v157 = vpop.permute.xlu0 %156
  %vm160 = vcmask 1044416
  %161 = vst.msk [vmem:[#allocation2 + $0x20] sm:$0xf] %vm160, %v155
  %162 = vst.msk [vmem:[#allocation2 + $0x24] sm:$0xf] %vm160, %v157
  %v163 = vld [vmem:[%s0] sm:$0xf]
  %v164 = vld [vmem:[%s0 + $0x4] sm:$0xf]
  %167 = vrot.lane.b32.xlu0 %v163, 119
  %v168 = vpop.permute.xlu0 %167
  %169 = vrot.lane.b32.xlu0 %v164, 119
  %v170 = vpop.permute.xlu0 %169
  %vm173 = vcmask 969728
  %174 = vst.msk [vmem:[#allocation2 + $0x28] sm:$0xf] %vm173, %v168
  %175 = vst.msk [vmem:[#allocation2 + $0x2c] sm:$0xf] %vm173, %v170
  %v176 = vld [vmem:[%s50] sm:$0xf]
  %v177 = vld [vmem:[%s50 + $0x4] sm:$0xf]
  %180 = vrot.lane.b32.xlu0 %v176, 119
  %v181 = vpop.permute.xlu0 %180
  %182 = vrot.lane.b32.xlu0 %v177, 119
  %v183 = vpop.permute.xlu0 %182
  %vm186 = vcmask 1044408
  %187 = vst.msk [vmem:[#allocation2 + $0x28] sm:$0xf] %vm186, %v181
  %188 = vst.msk [vmem:[#allocation2 + $0x2c] sm:$0xf] %vm186, %v183
  %v189 = vld [vmem:[%s0] sm:$0xf]
  %v190 = vld [vmem:[%s0 + $0x4] sm:$0xf]
  %193 = vrot.lane.b32.xlu0 %v189, 114
  %v194 = vpop.permute.xlu0 %193
  %195 = vrot.lane.b32.xlu0 %v190, 114
  %v196 = vpop.permute.xlu0 %195
  %vm199 = vcmask 928768
  %200 = vst.msk [vmem:[#allocation2 + $0x30] sm:$0xf] %vm199, %v194
  %201 = vst.msk [vmem:[#allocation2 + $0x34] sm:$0xf] %vm199, %v196
  %v202 = vld [vmem:[%s50] sm:$0xf]
  %v203 = vld [vmem:[%s50 + $0x4] sm:$0xf]
  %206 = vrot.lane.b32.xlu0 %v202, 114
  %v207 = vpop.permute.xlu0 %206
  %208 = vrot.lane.b32.xlu0 %v203, 114
  %v209 = vpop.permute.xlu0 %208
  %vm212 = vcmask 1044368
  %213 = vst.msk [vmem:[#allocation2 + $0x30] sm:$0xf] %vm212, %v207
  %214 = vst.msk [vmem:[#allocation2 + $0x34] sm:$0xf] %vm212, %v209
  %v215 = vld [vmem:[%s0] sm:$0xf]
  %v216 = vld [vmem:[%s0 + $0x4] sm:$0xf]
  %219 = vrot.lane.b32.xlu0 %v215, 113
  %v220 = vpop.permute.xlu0 %219
  %221 = vrot.lane.b32.xlu0 %v216, 113
  %v222 = vpop.permute.xlu0 %221
  %vm225 = vcmask 920576
  %226 = vst.msk [vmem:[#allocation2 + $0x38] sm:$0xf] %vm225, %v220
  %227 = vst.msk [vmem:[#allocation2 + $0x3c] sm:$0xf] %vm225, %v222
  %v228 = vld [vmem:[%s50] sm:$0xf]
  %v229 = vld [vmem:[%s50 + $0x4] sm:$0xf]
  %232 = vrot.lane.b32.xlu0 %v228, 113
  %v233 = vpop.permute.xlu0 %232
  %234 = vrot.lane.b32.xlu0 %v229, 113
  %v235 = vpop.permute.xlu0 %234
  %vm238 = vcmask 1044360
  %239 = vst.msk [vmem:[#allocation2 + $0x38] sm:$0xf] %vm238, %v233
  %240 = vst.msk [vmem:[#allocation2 + $0x3c] sm:$0xf] %vm238, %v235
  %v241 = vld [vmem:[%s0] sm:$0xf]
  %v242 = vld [vmem:[%s0 + $0x4] sm:$0xf]
  %245 = vrot.lane.b32.xlu0 %v241, 112
  %v246 = vpop.permute.xlu0 %245
  %247 = vrot.lane.b32.xlu0 %v242, 112
  %v248 = vpop.permute.xlu0 %247
  %vm251 = vcmask 912384
  %252 = vst.msk [vmem:[#allocation2 + $0x40] sm:$0xf] %vm251, %v246
  %253 = vst.msk [vmem:[#allocation2 + $0x44] sm:$0xf] %vm251, %v248
  %v254 = vld [vmem:[%s50] sm:$0xf]
  %v255 = vld [vmem:[%s50 + $0x4] sm:$0xf]
  %258 = vrot.lane.b32.xlu0 %v254, 112
  %v259 = vpop.permute.xlu0 %258
  %260 = vrot.lane.b32.xlu0 %v255, 112
  %v261 = vpop.permute.xlu0 %260
  %vm264 = vcmask 1044352
  %265 = vst.msk [vmem:[#allocation2 + $0x40] sm:$0xf] %vm264, %v259
  %266 = vst.msk [vmem:[#allocation2 + $0x44] sm:$0xf] %vm264, %v261
  %v267 = vld [vmem:[%s2] sm:$0xff]
  %v268 = vld [vmem:[%s2 + $0x8] sm:$0xff]
  %v269 = vld [vmem:[%s2 + $0x10] sm:$0xff]
  %v270 = vld [vmem:[%s2 + $0x18] sm:$0xff]
  %v271 = vld [vmem:[#allocation2] sm:$0xf]
  %v272 = vld [vmem:[#allocation2 + $0x4] sm:$0xf]
  %v273 = vld [vmem:[#allocation2 + $0x8] sm:$0xf]
  %v274 = vld [vmem:[#allocation2 + $0xc] sm:$0xf]
  %v275 = vld [vmem:[#allocation2 + $0x10] sm:$0xf]
  %v276 = vld [vmem:[#allocation2 + $0x14] sm:$0xf]
  %v277 = vld [vmem:[#allocation2 + $0x18] sm:$0xf]
  %v278 = vld [vmem:[#allocation2 + $0x1c] sm:$0xf]
  %v279 = vld [vmem:[#allocation2 + $0x20] sm:$0xf]
  %v280 = vld [vmem:[#allocation2 + $0x24] sm:$0xf]
  %v281 = vld [vmem:[#allocation2 + $0x28] sm:$0xf]
  %v282 = vld [vmem:[#allocation2 + $0x2c] sm:$0xf]
  %v283 = vld [vmem:[#allocation2 + $0x30] sm:$0xf]
  %v284 = vld [vmem:[#allocation2 + $0x34] sm:$0xf]
  %v285 = vld [vmem:[#allocation2 + $0x38] sm:$0xf]
  %v286 = vld [vmem:[#allocation2 + $0x3c] sm:$0xf]
  %v287 = vld [vmem:[#allocation2 + $0x40] sm:$0xf]
  %v288 = vld [vmem:[#allocation2 + $0x44] sm:$0xf]
  %v289 = vld [vmem:[%s3] sm:$0xff]
  %v290 = vld [vmem:[%s3 + $0x8] sm:$0xff]
  %v291 = vld [vmem:[%s3 + $0x10] sm:$0xff]
  %v292 = vld [vmem:[%s3 + $0x18] sm:$0xff]
  %294 = vset.pattern.permute.xlu0 0
  %295 = vperm.xlu0 %294, %v289
  %v296 = vpop.permute.xlu0 %295
  %299 = vset.pattern.permute.xlu0 0
  %300 = vperm.xlu0 %299, %v290
  %v301 = vpop.permute.xlu0 %300
  %304 = vset.pattern.permute.xlu0 0
  %305 = vperm.xlu0 %304, %v291
  %v306 = vpop.permute.xlu0 %305
  %309 = vset.pattern.permute.xlu0 0
  %310 = vperm.xlu0 %309, %v292
  %v311 = vpop.permute.xlu0 %310
  %v317 = vunpack.c.l.b16 %v267
  %v318 = vunpack.c.h.b16 %v267
  %v319 = vunpack.c.l.b16 %v268
  %v320 = vunpack.c.h.b16 %v268
  %v321 = vunpack.c.l.b16 %v269
  %v322 = vunpack.c.h.b16 %v269
  %v323 = vunpack.c.l.b16 %v270
  %v324 = vunpack.c.h.b16 %v270
  %v325 = vpack.c.b16 %v319, %v317
  %v326 = vpack.c.b16 %v320, %v318
  %v327 = vpack.c.b16 %v323, %v321
  %v328 = vpack.c.b16 %v324, %v322
  %v349 = vunpack.c.l.b16 %v271
  %v350 = vunpack.c.l.b16 %v272
  %v351 = vunpack.c.l.b16 %v273
  %v352 = vunpack.c.l.b16 %v274
  %v353 = vunpack.c.l.b16 %v275
  %v354 = vunpack.c.l.b16 %v276
  %v355 = vunpack.c.l.b16 %v277
  %v356 = vunpack.c.l.b16 %v278
  %v357 = vunpack.c.l.b16 %v279
  %v358 = vunpack.c.l.b16 %v280
  %v359 = vunpack.c.l.b16 %v281
  %v360 = vunpack.c.l.b16 %v282
  %v361 = vunpack.c.l.b16 %v283
  %v362 = vunpack.c.l.b16 %v284
  %v363 = vunpack.c.l.b16 %v285
  %v364 = vunpack.c.l.b16 %v286
  %v365 = vunpack.c.l.b16 %v287
  %v366 = vunpack.c.l.b16 %v288
  %v367 = vpack.c.b16 %v350, %v349
  %v368 = vpack.c.b16 %v352, %v351
  %v369 = vpack.c.b16 %v354, %v353
  %v370 = vpack.c.b16 %v356, %v355
  %v371 = vpack.c.b16 %v358, %v357
  %v372 = vpack.c.b16 %v360, %v359
  %v373 = vpack.c.b16 %v362, %v361
  %v374 = vpack.c.b16 %v364, %v363
  %v375 = vpack.c.b16 %v366, %v365
  %vm385 = vcmask 130048
  %v387 = vsel %vm385, %v326, 0
  %v390 = vsel %vm385, %v328, 0
  %392 = vmatprep.subr.bf16.mxu0 0
  %393 = vmatpush1.bf16.msra.mxu0 %v374
  %394 = vmatprep.subr.bf16.mxu0 0
  %395 = vmatpush1.bf16.msra.mxu0 %v373
  %396 = vmatprep.subr.bf16.mxu0 0
  %397 = vmatpush1.bf16.msra.mxu0 %v372
  %398 = vmatprep.subr.bf16.mxu0 0
  %399 = vmatpush1.bf16.msra.mxu0 %v371
  %400 = vmatprep.subr.bf16.mxu0 0
  %401 = vmatpush1.bf16.msra.mxu0 %v370
  %402 = vmatprep.subr.bf16.mxu0 0
  %403 = vmatpush1.bf16.msra.mxu0 %v369
  %404 = vmatprep.subr.bf16.mxu0 0
  %405 = vmatpush1.bf16.msra.mxu0 %v368
  %406 = vmatprep.subr.bf16.mxu0 0
  %407 = vmatpush1.bf16.msra.mxu0 %v367
  %408 = vmatprep.subr.bf16.mxu0 0
  %409 = vmatpush2.bf16.msra.mxu0 0
  %410 = vmatprep.subr.bf16.mxu0 0
  %411 = vmatpush2.bf16.msra.mxu0 0
  %412 = vmatprep.subr.bf16.mxu0 0
  %413 = vmatpush2.bf16.msra.mxu0 0
  %414 = vmatprep.subr.bf16.mxu0 0
  %415 = vmatpush2.bf16.msra.mxu0 0
  %416 = vmatprep.subr.bf16.mxu0 0
  %417 = vmatpush2.bf16.msra.mxu0 0
  %418 = vmatprep.subr.bf16.mxu0 0
  %419 = vmatpush2.bf16.msra.mxu0 0
  %420 = vmatprep.subr.bf16.mxu0 0
  %421 = vmatpush2.bf16.msra.mxu0 0
  %422 = vmatprep.subr.bf16.mxu0 0
  %423 = vmatpush2.bf16.msra.mxu0 %v375
  %424 = vmatprep.mubr.bf16.mxu0 %v387
  %425 = vmatmul.mubr.bf16.gmra.mxu0 %v325
  %v426 = vpop.f32.mrf.mxu0
  %v427 = vadd.f32 %v296, %v426
  %v428 = vpop.f32.mrf.mxu0
  %v429 = vpop.f32.mrf.mxu0
  %v430 = vadd.f32 %v301, %v429
  %v431 = vpop.f32.mrf.mxu0
  %432 = vmatprep.mubr.bf16.mxu0 %v390
  %433 = vmatmul.mubr.bf16.gmra.mxu0 %v327
  %v434 = vpop.f32.mrf.mxu0
  %v435 = vadd.f32 %v306, %v434
  %v436 = vpop.f32.mrf.mxu0
  %v437 = vpop.f32.mrf.mxu0
  %v438 = vadd.f32 %v311, %v437
  %v439 = vpop.f32.mrf.mxu0
  %440 = vdwg.mxu0
  %s441 = sld [smem:[#allocation3]]
  %vm442 = vcmp.gt.f32.partialorder %v427, 0.0
  %vm443 = vcmp.gt.f32.partialorder %v430, 0.0
  %vm444 = vcmp.gt.f32.partialorder %v435, 0.0
  %vm445 = vcmp.gt.f32.partialorder %v438, 0.0
  %v446 = vstv %s441
  %v447 = vmul.f32 %v446, %v427
  %v448 = vmul.f32 %v446, %v430
  %v449 = vmul.f32 %v446, %v435
  %v450 = vmul.f32 %v446, %v438
  %v451 = vsel %vm442, %v427, %v447
  %v452 = vsel %vm443, %v430, %v448
  %v453 = vsel %vm444, %v435, %v449
  %v454 = vsel %vm445, %v438, %v450
  %v455 = vld [vmem:[%s4] sm:$0x7]
  %v456 = vpack.c.bf16 %v452, %v451
  %v457 = vpack.c.bf16 %v454, %v453
  %v458 = vld [vmem:[%s5] sm:$0x1f]
  %460 = vset.pattern.permute.xlu0 0
  %461 = vperm.xlu0 %460, %v458
  %v462 = vpop.permute.xlu0 %461
  %vm464 = vcmask 261120
  %v466 = vsel %vm464, %v455, 0
  %468 = vmatprep.subr.bf16.mxu0 0
  %469 = vmatpush1.bf16.msra.mxu0 0
  %470 = vmatprep.subr.bf16.mxu0 0
  %471 = vmatpush1.bf16.msra.mxu0 0
  %472 = vmatprep.subr.bf16.mxu0 0
  %473 = vmatpush1.bf16.msra.mxu0 0
  %474 = vmatprep.subr.bf16.mxu0 0
  %475 = vmatpush1.bf16.msra.mxu0 0
  %476 = vmatprep.subr.bf16.mxu0 0
  %477 = vmatpush1.bf16.msra.mxu0 0
  %478 = vmatprep.subr.bf16.mxu0 0
  %479 = vmatpush1.bf16.msra.mxu0 0
  %480 = vmatprep.subr.bf16.mxu0 0
  %481 = vmatpush1.bf16.msra.mxu0 %v457
  %482 = vmatprep.subr.bf16.mxu0 0
  %483 = vmatpush1.bf16.msra.mxu0 %v456
  %484 = vmatprep.subr.bf16.mxu0 0
  %485 = vmatpush2.bf16.msra.mxu0 0
  %486 = vmatprep.subr.bf16.mxu0 0
  %487 = vmatpush2.bf16.msra.mxu0 0
  %488 = vmatprep.subr.bf16.mxu0 0
  %489 = vmatpush2.bf16.msra.mxu0 0
  %490 = vmatprep.subr.bf16.mxu0 0
  %491 = vmatpush2.bf16.msra.mxu0 0
  %492 = vmatprep.subr.bf16.mxu0 0
  %493 = vmatpush2.bf16.msra.mxu0 0
  %494 = vmatprep.subr.bf16.mxu0 0
  %495 = vmatpush2.bf16.msra.mxu0 0
  %496 = vmatprep.subr.bf16.mxu0 0
  %497 = vmatpush2.bf16.msra.mxu0 0
  %498 = vmatprep.subr.bf16.mxu0 0
  %499 = vmatpush2.bf16.msra.mxu0 0
  %500 = vmatprep.mubr.bf16.mxu0 0
  %501 = vmatmul.mubr.bf16.gmra.mxu0 %v466
  %v502 = vpop.f32.mrf.mxu0
  %v503 = vadd.f32 %v462, %v502
  %v504 = vpop.f32.mrf.mxu0
  %v505 = vpop.f32.mrf.mxu0
  %v506 = vpop.f32.mrf.mxu0
  %507 = vdwg.mxu0
  %v508 = vlaneseq
  %v509 = vshrl.u32 %v508, 7
  %vm510 = vcmp.eq.s32.totalorder %v509, 0
  %v511 = vxor.u32 %v503, 2147483648
  %v512 = vmul.f32 %v511, 1.442695
  %v513 = vpow.pop %v512
  %v514 = vadd.f32 %v513, 1.0
  %v515 = vrcp.pop %v514
  %v516 = vmul.f32 1.0, %v515
  %v517 = vsel %vm510, %v516, %v503
  %518 = vst [vmem:[%s7] sm:$0x1f] %v517
  // Predicated region
  $region30: #{pnet_forward.5} parent=0 // pred_check
    _
  $region31: #{pnet_forward.5} parent=0 // pred_check_branch
    %520 = sbr.rel (0) target = $region33
  $region32: #{pnet_forward.5} parent=0 // pred_region
    _
  $region33: #{pnet_forward.5} parent=0 // pred_fallthru
    _
  // Predicated region
  $region34: #{pnet_forward.5} parent=0 // pred_check
    _
  $region35: #{pnet_forward.5} parent=0 // pred_check_branch
    %522 = sbr.rel (0) target = $region37
  $region36: #{pnet_forward.5} parent=0 // pred_region
    _
  $region37: #{pnet_forward.5} parent=0 // pred_fallthru
    _

</llo_original>
